<compile_context>
chip_gen: v7x
topology: tpu7x:2x2x1
jax: 0.10.0
libtpu: 0.0.40
codegen_flags: <defaults>
</compile_context>

<pallas_src>
import functools

import jax
import jax.numpy as jnp
from jax import lax
from jax.experimental import pallas as pl
from jax.experimental.pallas import tpu as pltpu


# ---------------------------------------------------------------------------
# Fused Pallas kernel (one grid step == one batch element)
# ---------------------------------------------------------------------------

def _fused_up_block_kernel(x_ref, br_ref, th_ref, wup_ref, wcv_ref, s_ref,
                           g_ref, m_ref, pv_ref, o_ref, *,
                           up_k, out_k, pad, wu, hw, use_theta):
    f32 = jnp.float32
    bf16 = jnp.bfloat16
    c_out = o_ref.shape[1]

    # --- ConvTranspose2d(kernel=stride=up_k): non-overlapping pixel-shuffle
    #     upsample done as one-hot "spread" matmuls; result stays (C, H*W). ---
    x_b = x_ref[0].astype(bf16)                                    # (c_in, Hx*Wx)
    up = jnp.zeros((c_out, hw), f32)
    for t in range(up_k * up_k):
        spread = jnp.dot(x_b, s_ref[t], preferred_element_type=f32)        # (c_in, hw)
        up = up + jnp.dot(wup_ref[t], spread.astype(bf16),
                          preferred_element_type=f32)                      # (c_out, hw)
    up = up + pv_ref[:, 0:1]                                               # + upconv bias

    # --- center_crop(bridge) as a one-hot gather matmul (no relayout) ---
    br = jnp.dot(br_ref[0].astype(bf16), g_ref[...],
                 preferred_element_type=f32)                               # (c_br, hw)

    # --- implicit torch.cat([up, crop, theta_repeat], dim=1): VMEM only ---
    pieces = [up, br]
    if use_theta:
        th = jnp.broadcast_to(th_ref[0], (th_ref.shape[1], hw))            # (c_th, hw)
        pieces.append(th.astype(f32))
    slab = jnp.concatenate(pieces, axis=0).astype(bf16)                    # (c_tot, hw)

    # --- Conv2d(out_k, padding=pad) + ReLU + eval BatchNorm2d.
    #     Scatter form: per-tap matmul on the un-padded slab, static lane
    #     roll to align, precomputed boundary mask instead of zero padding. ---
    acc = jnp.zeros((c_out, hw), f32)
    for kh in range(out_k):
        for kw in range(out_k):
            t = kh * out_k + kw
            full = jnp.dot(wcv_ref[t], slab, preferred_element_type=f32)   # (c_out, hw)
            if kh == pad and kw == pad:
                acc = acc + full                       # center tap: no shift / mask
            else:
                shift = ((pad - kh) * wu + (pad - kw)) % hw
                acc = acc + jnp.roll(full, shift, axis=1) * m_ref[t:t + 1, :]

    y = jnp.maximum(acc + pv_ref[:, 1:2], 0.0)          # conv bias + ReLU
    y = y * pv_ref[:, 2:3] + pv_ref[:, 3:4]             # eval-mode BatchNorm2d
    o_ref[0] = y.astype(o_ref.dtype)                    # lane-dense (c_out, H*W) store


# ---------------------------------------------------------------------------
# One-time parameter preprocessing (hoisted out of the forward pass)
# ---------------------------------------------------------------------------

def prepare_unet_up_block_params(w_up, b_up, w_conv, b_conv,
                                 bn_gamma, bn_beta, bn_mean, bn_var, bn_eps,
                                 *, up_kernel, out_kernel, out_padding,
                                 x_spatial, bridge_spatial,
                                 bridge_channels, theta_channels):
    c_in, c_out, K, K2 = w_up.shape
    assert K == up_kernel and K2 == up_kernel
    c_out2, c_tot, Kk, Kk2 = w_conv.shape
    assert c_out2 == c_out and Kk == out_kernel and Kk2 == out_kernel
    assert c_out + bridge_channels + theta_channels == c_tot
    # TODO(synk): only the "same" conv case (out_kernel == 2*out_padding + 1)
    # is implemented in the fused scatter formulation.
    assert out_kernel == 2 * out_padding + 1

    Hx, Wx = x_spatial
    Hb, Wb = bridge_spatial
    Hu, Wu = Hx * K, Wx * K
    HW = Hu * Wu
    assert Hb >= Hu and Wb >= Wu
    dy = (Hb - Hu) // 2
    dx = (Wb - Wu) // 2

    # One-hot pixel-shuffle spread matrices: (K*K, Hx*Wx, Hu*Wu).
    h = jnp.arange(Hx)
    w = jnp.arange(Wx)
    src = (h[:, None] * Wx + w[None, :]).reshape(-1)
    s_up = jnp.zeros((K * K, Hx * Wx, HW), jnp.float32)
    for kh in range(K):
        for kw in range(K):
            dst = ((K * h[:, None] + kh) * Wu + (K * w[None, :] + kw)).reshape(-1)
            s_up = s_up.at[kh * K + kw, src, dst].set(1.0)

    # One-hot center-crop gather matrix: (Hb*Wb, Hu*Wu).
    oh = jnp.arange(Hu)
    ow = jnp.arange(Wu)
    gsrc = ((dy + oh)[:, None] * Wb + (dx + ow)[None, :]).reshape(-1)
    gdst = (oh[:, None] * Wu + ow[None, :]).reshape(-1)
    g_crop = jnp.zeros((Hb * Wb, HW), jnp.float32).at[gsrc, gdst].set(1.0)

    # Per-tap boundary masks replacing zero padding: (Kk*Kk, Hu*Wu).
    ohc, owc = oh[:, None], ow[None, :]
    masks = []
    for kh in range(Kk):
        for kw in range(Kk):
            m = ((ohc + kh - out_padding >= 0) & (ohc + kh - out_padding < Hu) &
                 (owc + kw - out_padding >= 0) & (owc + kw - out_padding < Wu))
            masks.append(m.reshape(-1).astype(jnp.float32))
    mask = jnp.stack(masks, axis=0)

    # Weight repacking (bf16 MXU operands, f32 accumulation in-kernel).
    w_up_t = jnp.transpose(w_up, (2, 3, 1, 0)).reshape(
        K * K, c_out, c_in).astype(jnp.bfloat16)
    w_conv_t = jnp.transpose(w_conv, (2, 3, 0, 1)).reshape(
        Kk * Kk, c_out, c_tot).astype(jnp.bfloat16)

    bn_scale = bn_gamma / jnp.sqrt(bn_var + bn_eps)
    bn_shift = bn_beta - bn_mean * bn_scale
    pvec = jnp.stack([b_up, b_conv, bn_scale, bn_shift], axis=1).astype(jnp.float32)

    cfg = dict(up_kernel=K, out_kernel=Kk, out_padding=out_padding,
               c_in=c_in, c_out=c_out, c_br=bridge_channels,
               c_th=theta_channels, c_tot=c_tot,
               hx=Hx, wx=Wx, hb=Hb, wb=Wb)
    return dict(cfg=cfg, w_up_t=w_up_t, w_conv_t=w_conv_t,
                s_up=s_up.astype(jnp.bfloat16),
                g_crop=g_crop.astype(jnp.bfloat16),
                mask=mask, pvec=pvec)


# ---------------------------------------------------------------------------
# Forward (PyTorch-facing NCHW in / NCHW out); all reshapes here are bitcasts.
# ---------------------------------------------------------------------------

def unet_up_block_forward(x, bridge, theta, params):
    cfg = params["cfg"]
    K, Kk, pad = cfg["up_kernel"], cfg["out_kernel"], cfg["out_padding"]
    c_in, c_out = cfg["c_in"], cfg["c_out"]
    c_br, c_th = cfg["c_br"], cfg["c_th"]

    N, cx, Hx, Wx = x.shape
    _, cb, Hb, Wb = bridge.shape
    assert cx == c_in and cb == c_br
    assert (Hx, Wx, Hb, Wb) == (cfg["hx"], cfg["wx"], cfg["hb"], cfg["wb"]), \
        "params were prepared for different spatial sizes"
    Hu, Wu = Hx * K, Wx * K
    HW = Hu * Wu

    x_r = x.reshape(N, c_in, Hx * Wx)
    br_r = bridge.reshape(N, c_br, Hb * Wb)
    if c_th > 0:
        assert theta is not None
        # TODO(synk): torch's theta.repeat would tile a theta with spatial
        # extent > 1; only the (N, C, 1, 1) broadcast case is implemented.
        assert theta.shape == (N, c_th, 1, 1)
        th_r = theta.reshape(N, c_th, 1)
    else:
        th_r = jnp.zeros((N, 1, 1), x.dtype)

    kernel = functools.partial(
        _fused_up_block_kernel, up_k=K, out_k=Kk, pad=pad, wu=Wu, hw=HW,
        use_theta=(c_th > 0))

    out = pl.pallas_call(
        kernel,
        out_shape=jax.ShapeDtypeStruct((N, c_out, HW), jnp.float32),
        grid=(N,),
        in_specs=[
            pl.BlockSpec((1, c_in, Hx * Wx), lambda n: (n, 0, 0)),
            pl.BlockSpec((1, c_br, Hb * Wb), lambda n: (n, 0, 0)),
            pl.BlockSpec((1, th_r.shape[1], 1), lambda n: (n, 0, 0)),
            pl.BlockSpec(params["w_up_t"].shape, lambda n: (0, 0, 0)),
            pl.BlockSpec(params["w_conv_t"].shape, lambda n: (0, 0, 0)),
            pl.BlockSpec(params["s_up"].shape, lambda n: (0, 0, 0)),
            pl.BlockSpec(params["g_crop"].shape, lambda n: (0, 0)),
            pl.BlockSpec(params["mask"].shape, lambda n: (0, 0)),
            pl.BlockSpec(params["pvec"].shape, lambda n: (0, 0)),
        ],
        out_specs=pl.BlockSpec((1, c_out, HW), lambda n: (n, 0, 0)),
        compiler_params=pltpu.CompilerParams(
            dimension_semantics=("parallel",)),
    )(x_r, br_r, th_r, params["w_up_t"], params["w_conv_t"],
      params["s_up"], params["g_crop"], params["mask"], params["pvec"])

    return out.reshape(N, c_out, Hu, Wu)


# ---------------------------------------------------------------------------
# Pure-JAX reference (same bf16-operand / f32-accumulate dataflow)
# ---------------------------------------------------------------------------

def reference_forward(x, bridge, theta, raw):
    K = raw["up_kernel"]
    pad = raw["out_padding"]
    bf16 = jnp.bfloat16
    up = jnp.einsum("nchw,codk->nohdwk", x.astype(bf16),
                    raw["w_up"].astype(bf16),
                    preferred_element_type=jnp.float32)
    N, co, H, Kd, W, Kw = up.shape
    up = up.reshape(N, co, H * Kd, W * Kw) + raw["b_up"][None, :, None, None]
    Hu, Wu = H * K, W * K
    dy = (bridge.shape[2] - Hu) // 2
    dx = (bridge.shape[3] - Wu) // 2
    crop = bridge[:, :, dy:dy + Hu, dx:dx + Wu]
    pieces = [up, crop]
    if theta is not None:
        pieces.append(jnp.broadcast_to(theta, (N, theta.shape[1], Hu, Wu)))
    cat = jnp.concatenate(pieces, axis=1)
    out = lax.conv_general_dilated(
        cat.astype(bf16), raw["w_conv"].astype(bf16),
        window_strides=(1, 1), padding=[(pad, pad), (pad, pad)],
        dimension_numbers=("NCHW", "OIHW", "NCHW"),
        preferred_element_type=jnp.float32)
    out = out + raw["b_conv"][None, :, None, None]
    out = jnp.maximum(out, 0.0)
    out = out * raw["bn_scale"][None, :, None, None] + raw["bn_shift"][None, :, None, None]
    return out


# ---------------------------------------------------------------------------
# Main
# ---------------------------------------------------------------------------

if __name__ == "__main__":
    # Module configuration: in_size=8, in_conv_size=20, out_size=8,
    # up_mode='upconv', up_kernel=2, out_kernel=3, out_padding=1,
    # theta channels = 4 -> in_conv_size = out_size + bridge_ch + 4 = 20.
    N = 2
    in_size, out_size = 8, 8
    bridge_ch, theta_ch = 8, 4
    in_conv_size = out_size + bridge_ch + theta_ch            # 20
    up_kernel, out_kernel, out_padding = 2, 3, 1
    Hx = Wx = 8                                               # x spatial
    Hb = Wb = 20                                              # bridge spatial

    key = jax.random.PRNGKey(0)
    ks = jax.random.split(key, 12)

    # Parameters (PyTorch weight layouts: ConvTranspose2d (Cin,Cout,K,K),
    # Conv2d OIHW).
    w_up = 0.1 * jax.random.normal(
        ks[0], (in_size, out_size, up_kernel, up_kernel), jnp.float32)
    b_up = 0.1 * jax.random.normal(ks[1], (out_size,), jnp.float32)
    w_conv = 0.1 * jax.random.normal(
        ks[2], (out_size, in_conv_size, out_kernel, out_kernel), jnp.float32)
    b_conv = 0.1 * jax.random.normal(ks[3], (out_size,), jnp.float32)
    bn_gamma = 1.0 + 0.1 * jax.random.normal(ks[4], (out_size,), jnp.float32)
    bn_beta = 0.1 * jax.random.normal(ks[5], (out_size,), jnp.float32)
    bn_mean = 0.1 * jax.random.normal(ks[6], (out_size,), jnp.float32)
    bn_var = 1.0 + jax.nn.softplus(
        jax.random.normal(ks[7], (out_size,), jnp.float32))
    bn_eps = 1e-5

    params = prepare_unet_up_block_params(
        w_up, b_up, w_conv, b_conv, bn_gamma, bn_beta, bn_mean, bn_var, bn_eps,
        up_kernel=up_kernel, out_kernel=out_kernel, out_padding=out_padding,
        x_spatial=(Hx, Wx), bridge_spatial=(Hb, Wb),
        bridge_channels=bridge_ch, theta_channels=theta_ch)

    # Inputs (NCHW, matching the PyTorch module).
    x = jax.random.normal(ks[8], (N, in_size, Hx, Wx), jnp.float32)
    bridge = jax.random.normal(ks[9], (N, bridge_ch, Hb, Wb), jnp.float32)
    theta = jax.random.normal(ks[10], (N, theta_ch, 1, 1), jnp.float32)

    fwd = jax.jit(lambda a, b, c: unet_up_block_forward(a, b, c, params))
    out = jax.block_until_ready(fwd(x, bridge, theta))

    bn_scale = bn_gamma / jnp.sqrt(bn_var + bn_eps)
    raw = dict(w_up=w_up, b_up=b_up, w_conv=w_conv, b_conv=b_conv,
               bn_scale=bn_scale, bn_shift=bn_beta - bn_mean * bn_scale,
               up_kernel=up_kernel, out_padding=out_padding)
    ref = reference_forward(x, bridge, theta, raw)

    assert out.shape == (N, out_size, Hx * up_kernel, Wx * up_kernel), out.shape
    max_err = float(jnp.max(jnp.abs(out - ref)))
    assert jnp.allclose(out, ref, rtol=2e-2, atol=2e-2), max_err
    print("KERNEL_OK")
</pallas_src>

<mosaic_0001>
module attributes {stable_mosaic.version = 11 : i64} {
  func.func @_fused_up_block_kernel(%arg0: i32, %arg1: memref<1x8x64xf32, #tpu.memory_space<vmem>>, %arg2: memref<1x8x400xf32, #tpu.memory_space<vmem>>, %arg3: memref<1x4x1xf32, #tpu.memory_space<vmem>>, %arg4: memref<4x8x8xbf16, #tpu.memory_space<vmem>>, %arg5: memref<9x8x20xbf16, #tpu.memory_space<vmem>>, %arg6: memref<4x64x256xbf16, #tpu.memory_space<vmem>>, %arg7: memref<400x256xbf16, #tpu.memory_space<vmem>>, %arg8: memref<9x256xf32, #tpu.memory_space<vmem>>, %arg9: memref<8x4xf32, #tpu.memory_space<vmem>>, %arg10: memref<1x8x256xf32, #tpu.memory_space<vmem>>) attributes {dimension_semantics = [#tpu.dimension_semantics<parallel>], iteration_bounds = array<i64: 2>, scalar_prefetch = 0 : i64, scratch_operands = 0 : i64, tpu.core_type = #tpu.core_type<tc>, window_params = [{transform_indices = @transform_0, window_bounds = array<i64: 1, 8, 64>}, {transform_indices = @transform_1, window_bounds = array<i64: 1, 8, 400>}, {transform_indices = @transform_2, window_bounds = array<i64: 1, 4, 1>}, {pipeline_mode = #tpu.pipeline_mode<synchronous>, transform_indices = @transform_3, window_bounds = array<i64: 4, 8, 8>}, {pipeline_mode = #tpu.pipeline_mode<synchronous>, transform_indices = @transform_4, window_bounds = array<i64: 9, 8, 20>}, {pipeline_mode = #tpu.pipeline_mode<synchronous>, transform_indices = @transform_5, window_bounds = array<i64: 4, 64, 256>}, {pipeline_mode = #tpu.pipeline_mode<synchronous>, transform_indices = @transform_6, window_bounds = array<i64: 400, 256>}, {pipeline_mode = #tpu.pipeline_mode<synchronous>, transform_indices = @transform_7, window_bounds = array<i64: 9, 256>}, {pipeline_mode = #tpu.pipeline_mode<synchronous>, transform_indices = @transform_8, window_bounds = array<i64: 8, 4>}, {transform_indices = @transform_9, window_bounds = array<i64: 1, 8, 256>}]} {
    %c0 = arith.constant 0 : index
    %c0_0 = arith.constant 0 : index
    %c0_1 = arith.constant 0 : index
    %0 = vector.load %arg1[%c0, %c0_0, %c0_1] : memref<1x8x64xf32, #tpu.memory_space<vmem>>, vector<1x8x64xf32>
    %1 = vector.shape_cast %0 : vector<1x8x64xf32> to vector<8x64xf32>
    %2 = arith.truncf %1 : vector<8x64xf32> to vector<8x64xbf16>
    %cst = arith.constant 0.000000e+00 : f32
    %3 = vector.broadcast %cst : f32 to vector<8x256xf32>
    %c0_2 = arith.constant 0 : index
    %c0_3 = arith.constant 0 : index
    %c0_4 = arith.constant 0 : index
    %4 = vector.load %arg6[%c0_2, %c0_3, %c0_4] : memref<4x64x256xbf16, #tpu.memory_space<vmem>>, vector<1x64x256xbf16>
    %5 = vector.shape_cast %4 : vector<1x64x256xbf16> to vector<64x256xbf16>
    %cst_5 = arith.constant dense<0.000000e+00> : vector<8x256xf32>
    %6 = tpu.matmul %2, %5, %cst_5 {dimension_numbers = #tpu.dot_dimension_numbers<[1], [0], [0], [1], [0, 0, 1, 1], [], []>} : vector<8x64xbf16>, vector<64x256xbf16>, vector<8x256xf32> -> vector<8x256xf32>
    %c0_6 = arith.constant 0 : index
    %c0_7 = arith.constant 0 : index
    %c0_8 = arith.constant 0 : index
    %7 = vector.load %arg4[%c0_6, %c0_7, %c0_8] : memref<4x8x8xbf16, #tpu.memory_space<vmem>>, vector<1x8x8xbf16>
    %8 = vector.shape_cast %7 : vector<1x8x8xbf16> to vector<8x8xbf16>
    %9 = arith.truncf %6 : vector<8x256xf32> to vector<8x256xbf16>
    %cst_9 = arith.constant dense<0.000000e+00> : vector<8x256xf32>
    %10 = tpu.matmul %8, %9, %cst_9 {dimension_numbers = #tpu.dot_dimension_numbers<[1], [0], [0], [1], [0, 0, 1, 1], [], []>} : vector<8x8xbf16>, vector<8x256xbf16>, vector<8x256xf32> -> vector<8x256xf32>
    %11 = arith.addf %3, %10 : vector<8x256xf32>
    %c1 = arith.constant 1 : index
    %c0_10 = arith.constant 0 : index
    %c0_11 = arith.constant 0 : index
    %12 = vector.load %arg6[%c1, %c0_10, %c0_11] : memref<4x64x256xbf16, #tpu.memory_space<vmem>>, vector<1x64x256xbf16>
    %13 = vector.shape_cast %12 : vector<1x64x256xbf16> to vector<64x256xbf16>
    %cst_12 = arith.constant dense<0.000000e+00> : vector<8x256xf32>
    %14 = tpu.matmul %2, %13, %cst_12 {dimension_numbers = #tpu.dot_dimension_numbers<[1], [0], [0], [1], [0, 0, 1, 1], [], []>} : vector<8x64xbf16>, vector<64x256xbf16>, vector<8x256xf32> -> vector<8x256xf32>
    %c1_13 = arith.constant 1 : index
    %c0_14 = arith.constant 0 : index
    %c0_15 = arith.constant 0 : index
    %15 = vector.load %arg4[%c1_13, %c0_14, %c0_15] : memref<4x8x8xbf16, #tpu.memory_space<vmem>>, vector<1x8x8xbf16>
    %16 = vector.shape_cast %15 : vector<1x8x8xbf16> to vector<8x8xbf16>
    %17 = arith.truncf %14 : vector<8x256xf32> to vector<8x256xbf16>
    %cst_16 = arith.constant dense<0.000000e+00> : vector<8x256xf32>
    %18 = tpu.matmul %16, %17, %cst_16 {dimension_numbers = #tpu.dot_dimension_numbers<[1], [0], [0], [1], [0, 0, 1, 1], [], []>} : vector<8x8xbf16>, vector<8x256xbf16>, vector<8x256xf32> -> vector<8x256xf32>
    %19 = arith.addf %11, %18 : vector<8x256xf32>
    %c2 = arith.constant 2 : index
    %c0_17 = arith.constant 0 : index
    %c0_18 = arith.constant 0 : index
    %20 = vector.load %arg6[%c2, %c0_17, %c0_18] : memref<4x64x256xbf16, #tpu.memory_space<vmem>>, vector<1x64x256xbf16>
    %21 = vector.shape_cast %20 : vector<1x64x256xbf16> to vector<64x256xbf16>
    %cst_19 = arith.constant dense<0.000000e+00> : vector<8x256xf32>
    %22 = tpu.matmul %2, %21, %cst_19 {dimension_numbers = #tpu.dot_dimension_numbers<[1], [0], [0], [1], [0, 0, 1, 1], [], []>} : vector<8x64xbf16>, vector<64x256xbf16>, vector<8x256xf32> -> vector<8x256xf32>
    %c2_20 = arith.constant 2 : index
    %c0_21 = arith.constant 0 : index
    %c0_22 = arith.constant 0 : index
    %23 = vector.load %arg4[%c2_20, %c0_21, %c0_22] : memref<4x8x8xbf16, #tpu.memory_space<vmem>>, vector<1x8x8xbf16>
    %24 = vector.shape_cast %23 : vector<1x8x8xbf16> to vector<8x8xbf16>
    %25 = arith.truncf %22 : vector<8x256xf32> to vector<8x256xbf16>
    %cst_23 = arith.constant dense<0.000000e+00> : vector<8x256xf32>
    %26 = tpu.matmul %24, %25, %cst_23 {dimension_numbers = #tpu.dot_dimension_numbers<[1], [0], [0], [1], [0, 0, 1, 1], [], []>} : vector<8x8xbf16>, vector<8x256xbf16>, vector<8x256xf32> -> vector<8x256xf32>
    %27 = arith.addf %19, %26 : vector<8x256xf32>
    %c3 = arith.constant 3 : index
    %c0_24 = arith.constant 0 : index
    %c0_25 = arith.constant 0 : index
    %28 = vector.load %arg6[%c3, %c0_24, %c0_25] : memref<4x64x256xbf16, #tpu.memory_space<vmem>>, vector<1x64x256xbf16>
    %29 = vector.shape_cast %28 : vector<1x64x256xbf16> to vector<64x256xbf16>
    %cst_26 = arith.constant dense<0.000000e+00> : vector<8x256xf32>
    %30 = tpu.matmul %2, %29, %cst_26 {dimension_numbers = #tpu.dot_dimension_numbers<[1], [0], [0], [1], [0, 0, 1, 1], [], []>} : vector<8x64xbf16>, vector<64x256xbf16>, vector<8x256xf32> -> vector<8x256xf32>
    %c3_27 = arith.constant 3 : index
    %c0_28 = arith.constant 0 : index
    %c0_29 = arith.constant 0 : index
    %31 = vector.load %arg4[%c3_27, %c0_28, %c0_29] : memref<4x8x8xbf16, #tpu.memory_space<vmem>>, vector<1x8x8xbf16>
    %32 = vector.shape_cast %31 : vector<1x8x8xbf16> to vector<8x8xbf16>
    %33 = arith.truncf %30 : vector<8x256xf32> to vector<8x256xbf16>
    %cst_30 = arith.constant dense<0.000000e+00> : vector<8x256xf32>
    %34 = tpu.matmul %32, %33, %cst_30 {dimension_numbers = #tpu.dot_dimension_numbers<[1], [0], [0], [1], [0, 0, 1, 1], [], []>} : vector<8x8xbf16>, vector<8x256xbf16>, vector<8x256xf32> -> vector<8x256xf32>
    %35 = arith.addf %27, %34 : vector<8x256xf32>
    %c0_31 = arith.constant 0 : index
    %c0_32 = arith.constant 0 : index
    %36 = vector.load %arg9[%c0_31, %c0_32] : memref<8x4xf32, #tpu.memory_space<vmem>>, vector<8x1xf32>
    %37 = vector.broadcast %36 : vector<8x1xf32> to vector<8x256xf32>
    %38 = arith.addf %35, %37 : vector<8x256xf32>
    %c0_33 = arith.constant 0 : index
    %c0_34 = arith.constant 0 : index
    %c0_35 = arith.constant 0 : index
    %39 = vector.load %arg2[%c0_33, %c0_34, %c0_35] : memref<1x8x400xf32, #tpu.memory_space<vmem>>, vector<1x8x400xf32>
    %40 = vector.shape_cast %39 : vector<1x8x400xf32> to vector<8x400xf32>
    %41 = arith.truncf %40 : vector<8x400xf32> to vector<8x400xbf16>
    %c0_36 = arith.constant 0 : index
    %c0_37 = arith.constant 0 : index
    %42 = vector.load %arg7[%c0_36, %c0_37] : memref<400x256xbf16, #tpu.memory_space<vmem>>, vector<400x256xbf16>
    %cst_38 = arith.constant dense<0.000000e+00> : vector<8x256xf32>
    %43 = tpu.matmul %41, %42, %cst_38 {dimension_numbers = #tpu.dot_dimension_numbers<[1], [0], [0], [1], [0, 0, 1, 1], [], []>} : vector<8x400xbf16>, vector<400x256xbf16>, vector<8x256xf32> -> vector<8x256xf32>
    %c0_39 = arith.constant 0 : index
    %c0_40 = arith.constant 0 : index
    %c0_41 = arith.constant 0 : index
    %44 = vector.load %arg3[%c0_39, %c0_40, %c0_41] : memref<1x4x1xf32, #tpu.memory_space<vmem>>, vector<1x4x1xf32>
    %45 = vector.shape_cast %44 : vector<1x4x1xf32> to vector<4x1xf32>
    %46 = vector.shape_cast %45 : vector<4x1xf32> to vector<4x1xf32>
    %47 = vector.broadcast %46 : vector<4x1xf32> to vector<4x256xf32>
    %48 = tpu.concatenate %38, %43, %47 in 0 : vector<8x256xf32>, vector<8x256xf32>, vector<4x256xf32> -> vector<20x256xf32>
    %49 = arith.truncf %48 : vector<20x256xf32> to vector<20x256xbf16>
    %cst_42 = arith.constant 0.000000e+00 : f32
    %50 = vector.broadcast %cst_42 : f32 to vector<8x256xf32>
    %c0_43 = arith.constant 0 : index
    %c0_44 = arith.constant 0 : index
    %c0_45 = arith.constant 0 : index
    %51 = vector.load %arg5[%c0_43, %c0_44, %c0_45] : memref<9x8x20xbf16, #tpu.memory_space<vmem>>, vector<1x8x20xbf16>
    %52 = vector.shape_cast %51 : vector<1x8x20xbf16> to vector<8x20xbf16>
    %cst_46 = arith.constant dense<0.000000e+00> : vector<8x256xf32>
    %53 = tpu.matmul %52, %49, %cst_46 {dimension_numbers = #tpu.dot_dimension_numbers<[1], [0], [0], [1], [0, 0, 1, 1], [], []>} : vector<8x20xbf16>, vector<20x256xbf16>, vector<8x256xf32> -> vector<8x256xf32>
    %54 = vector.extract_strided_slice %53 {offsets = [0, 239], sizes = [8, 17], strides = [1, 1]} : vector<8x256xf32> to vector<8x17xf32>
    %55 = vector.extract_strided_slice %53 {offsets = [0, 0], sizes = [8, 239], strides = [1, 1]} : vector<8x256xf32> to vector<8x239xf32>
    %56 = tpu.concatenate %54, %55 in 1 : vector<8x17xf32>, vector<8x239xf32> -> vector<8x256xf32>
    %c0_47 = arith.constant 0 : index
    %c0_48 = arith.constant 0 : index
    %57 = vector.load %arg8[%c0_47, %c0_48] : memref<9x256xf32, #tpu.memory_space<vmem>>, vector<1x256xf32>
    %58 = vector.broadcast %57 : vector<1x256xf32> to vector<8x256xf32>
    %59 = arith.mulf %56, %58 : vector<8x256xf32>
    %60 = arith.addf %50, %59 : vector<8x256xf32>
    %c1_49 = arith.constant 1 : index
    %c0_50 = arith.constant 0 : index
    %c0_51 = arith.constant 0 : index
    %61 = vector.load %arg5[%c1_49, %c0_50, %c0_51] : memref<9x8x20xbf16, #tpu.memory_space<vmem>>, vector<1x8x20xbf16>
    %62 = vector.shape_cast %61 : vector<1x8x20xbf16> to vector<8x20xbf16>
    %cst_52 = arith.constant dense<0.000000e+00> : vector<8x256xf32>
    %63 = tpu.matmul %62, %49, %cst_52 {dimension_numbers = #tpu.dot_dimension_numbers<[1], [0], [0], [1], [0, 0, 1, 1], [], []>} : vector<8x20xbf16>, vector<20x256xbf16>, vector<8x256xf32> -> vector<8x256xf32>
    %64 = vector.extract_strided_slice %63 {offsets = [0, 240], sizes = [8, 16], strides = [1, 1]} : vector<8x256xf32> to vector<8x16xf32>
    %65 = vector.extract_strided_slice %63 {offsets = [0, 0], sizes = [8, 240], strides = [1, 1]} : vector<8x256xf32> to vector<8x240xf32>
    %66 = tpu.concatenate %64, %65 in 1 : vector<8x16xf32>, vector<8x240xf32> -> vector<8x256xf32>
    %c1_53 = arith.constant 1 : index
    %c0_54 = arith.constant 0 : index
    %67 = vector.load %arg8[%c1_53, %c0_54] : memref<9x256xf32, #tpu.memory_space<vmem>>, vector<1x256xf32>
    %68 = vector.broadcast %67 : vector<1x256xf32> to vector<8x256xf32>
    %69 = arith.mulf %66, %68 : vector<8x256xf32>
    %70 = arith.addf %60, %69 : vector<8x256xf32>
    %c2_55 = arith.constant 2 : index
    %c0_56 = arith.constant 0 : index
    %c0_57 = arith.constant 0 : index
    %71 = vector.load %arg5[%c2_55, %c0_56, %c0_57] : memref<9x8x20xbf16, #tpu.memory_space<vmem>>, vector<1x8x20xbf16>
    %72 = vector.shape_cast %71 : vector<1x8x20xbf16> to vector<8x20xbf16>
    %cst_58 = arith.constant dense<0.000000e+00> : vector<8x256xf32>
    %73 = tpu.matmul %72, %49, %cst_58 {dimension_numbers = #tpu.dot_dimension_numbers<[1], [0], [0], [1], [0, 0, 1, 1], [], []>} : vector<8x20xbf16>, vector<20x256xbf16>, vector<8x256xf32> -> vector<8x256xf32>
    %74 = vector.extract_strided_slice %73 {offsets = [0, 241], sizes = [8, 15], strides = [1, 1]} : vector<8x256xf32> to vector<8x15xf32>
    %75 = vector.extract_strided_slice %73 {offsets = [0, 0], sizes = [8, 241], strides = [1, 1]} : vector<8x256xf32> to vector<8x241xf32>
    %76 = tpu.concatenate %74, %75 in 1 : vector<8x15xf32>, vector<8x241xf32> -> vector<8x256xf32>
    %c2_59 = arith.constant 2 : index
    %c0_60 = arith.constant 0 : index
    %77 = vector.load %arg8[%c2_59, %c0_60] : memref<9x256xf32, #tpu.memory_space<vmem>>, vector<1x256xf32>
    %78 = vector.broadcast %77 : vector<1x256xf32> to vector<8x256xf32>
    %79 = arith.mulf %76, %78 : vector<8x256xf32>
    %80 = arith.addf %70, %79 : vector<8x256xf32>
    %c3_61 = arith.constant 3 : index
    %c0_62 = arith.constant 0 : index
    %c0_63 = arith.constant 0 : index
    %81 = vector.load %arg5[%c3_61, %c0_62, %c0_63] : memref<9x8x20xbf16, #tpu.memory_space<vmem>>, vector<1x8x20xbf16>
    %82 = vector.shape_cast %81 : vector<1x8x20xbf16> to vector<8x20xbf16>
    %cst_64 = arith.constant dense<0.000000e+00> : vector<8x256xf32>
    %83 = tpu.matmul %82, %49, %cst_64 {dimension_numbers = #tpu.dot_dimension_numbers<[1], [0], [0], [1], [0, 0, 1, 1], [], []>} : vector<8x20xbf16>, vector<20x256xbf16>, vector<8x256xf32> -> vector<8x256xf32>
    %84 = vector.extract_strided_slice %83 {offsets = [0, 255], sizes = [8, 1], strides = [1, 1]} : vector<8x256xf32> to vector<8x1xf32>
    %85 = vector.extract_strided_slice %83 {offsets = [0, 0], sizes = [8, 255], strides = [1, 1]} : vector<8x256xf32> to vector<8x255xf32>
    %86 = tpu.concatenate %84, %85 in 1 : vector<8x1xf32>, vector<8x255xf32> -> vector<8x256xf32>
    %c3_65 = arith.constant 3 : index
    %c0_66 = arith.constant 0 : index
    %87 = vector.load %arg8[%c3_65, %c0_66] : memref<9x256xf32, #tpu.memory_space<vmem>>, vector<1x256xf32>
    %88 = vector.broadcast %87 : vector<1x256xf32> to vector<8x256xf32>
    %89 = arith.mulf %86, %88 : vector<8x256xf32>
    %90 = arith.addf %80, %89 : vector<8x256xf32>
    %c4 = arith.constant 4 : index
    %c0_67 = arith.constant 0 : index
    %c0_68 = arith.constant 0 : index
    %91 = vector.load %arg5[%c4, %c0_67, %c0_68] : memref<9x8x20xbf16, #tpu.memory_space<vmem>>, vector<1x8x20xbf16>
    %92 = vector.shape_cast %91 : vector<1x8x20xbf16> to vector<8x20xbf16>
    %cst_69 = arith.constant dense<0.000000e+00> : vector<8x256xf32>
    %93 = tpu.matmul %92, %49, %cst_69 {dimension_numbers = #tpu.dot_dimension_numbers<[1], [0], [0], [1], [0, 0, 1, 1], [], []>} : vector<8x20xbf16>, vector<20x256xbf16>, vector<8x256xf32> -> vector<8x256xf32>
    %94 = arith.addf %90, %93 : vector<8x256xf32>
    %c5 = arith.constant 5 : index
    %c0_70 = arith.constant 0 : index
    %c0_71 = arith.constant 0 : index
    %95 = vector.load %arg5[%c5, %c0_70, %c0_71] : memref<9x8x20xbf16, #tpu.memory_space<vmem>>, vector<1x8x20xbf16>
    %96 = vector.shape_cast %95 : vector<1x8x20xbf16> to vector<8x20xbf16>
    %cst_72 = arith.constant dense<0.000000e+00> : vector<8x256xf32>
    %97 = tpu.matmul %96, %49, %cst_72 {dimension_numbers = #tpu.dot_dimension_numbers<[1], [0], [0], [1], [0, 0, 1, 1], [], []>} : vector<8x20xbf16>, vector<20x256xbf16>, vector<8x256xf32> -> vector<8x256xf32>
    %98 = vector.extract_strided_slice %97 {offsets = [0, 1], sizes = [8, 255], strides = [1, 1]} : vector<8x256xf32> to vector<8x255xf32>
    %99 = vector.extract_strided_slice %97 {offsets = [0, 0], sizes = [8, 1], strides = [1, 1]} : vector<8x256xf32> to vector<8x1xf32>
    %100 = tpu.concatenate %98, %99 in 1 : vector<8x255xf32>, vector<8x1xf32> -> vector<8x256xf32>
    %c5_73 = arith.constant 5 : index
    %c0_74 = arith.constant 0 : index
    %101 = vector.load %arg8[%c5_73, %c0_74] : memref<9x256xf32, #tpu.memory_space<vmem>>, vector<1x256xf32>
    %102 = vector.broadcast %101 : vector<1x256xf32> to vector<8x256xf32>
    %103 = arith.mulf %100, %102 : vector<8x256xf32>
    %104 = arith.addf %94, %103 : vector<8x256xf32>
    %c6 = arith.constant 6 : index
    %c0_75 = arith.constant 0 : index
    %c0_76 = arith.constant 0 : index
    %105 = vector.load %arg5[%c6, %c0_75, %c0_76] : memref<9x8x20xbf16, #tpu.memory_space<vmem>>, vector<1x8x20xbf16>
    %106 = vector.shape_cast %105 : vector<1x8x20xbf16> to vector<8x20xbf16>
    %cst_77 = arith.constant dense<0.000000e+00> : vector<8x256xf32>
    %107 = tpu.matmul %106, %49, %cst_77 {dimension_numbers = #tpu.dot_dimension_numbers<[1], [0], [0], [1], [0, 0, 1, 1], [], []>} : vector<8x20xbf16>, vector<20x256xbf16>, vector<8x256xf32> -> vector<8x256xf32>
    %108 = vector.extract_strided_slice %107 {offsets = [0, 15], sizes = [8, 241], strides = [1, 1]} : vector<8x256xf32> to vector<8x241xf32>
    %109 = vector.extract_strided_slice %107 {offsets = [0, 0], sizes = [8, 15], strides = [1, 1]} : vector<8x256xf32> to vector<8x15xf32>
    %110 = tpu.concatenate %108, %109 in 1 : vector<8x241xf32>, vector<8x15xf32> -> vector<8x256xf32>
    %c6_78 = arith.constant 6 : index
    %c0_79 = arith.constant 0 : index
    %111 = vector.load %arg8[%c6_78, %c0_79] : memref<9x256xf32, #tpu.memory_space<vmem>>, vector<1x256xf32>
    %112 = vector.broadcast %111 : vector<1x256xf32> to vector<8x256xf32>
    %113 = arith.mulf %110, %112 : vector<8x256xf32>
    %114 = arith.addf %104, %113 : vector<8x256xf32>
    %c7 = arith.constant 7 : index
    %c0_80 = arith.constant 0 : index
    %c0_81 = arith.constant 0 : index
    %115 = vector.load %arg5[%c7, %c0_80, %c0_81] : memref<9x8x20xbf16, #tpu.memory_space<vmem>>, vector<1x8x20xbf16>
    %116 = vector.shape_cast %115 : vector<1x8x20xbf16> to vector<8x20xbf16>
    %cst_82 = arith.constant dense<0.000000e+00> : vector<8x256xf32>
    %117 = tpu.matmul %116, %49, %cst_82 {dimension_numbers = #tpu.dot_dimension_numbers<[1], [0], [0], [1], [0, 0, 1, 1], [], []>} : vector<8x20xbf16>, vector<20x256xbf16>, vector<8x256xf32> -> vector<8x256xf32>
    %118 = vector.extract_strided_slice %117 {offsets = [0, 16], sizes = [8, 240], strides = [1, 1]} : vector<8x256xf32> to vector<8x240xf32>
    %119 = vector.extract_strided_slice %117 {offsets = [0, 0], sizes = [8, 16], strides = [1, 1]} : vector<8x256xf32> to vector<8x16xf32>
    %120 = tpu.concatenate %118, %119 in 1 : vector<8x240xf32>, vector<8x16xf32> -> vector<8x256xf32>
    %c7_83 = arith.constant 7 : index
    %c0_84 = arith.constant 0 : index
    %121 = vector.load %arg8[%c7_83, %c0_84] : memref<9x256xf32, #tpu.memory_space<vmem>>, vector<1x256xf32>
    %122 = vector.broadcast %121 : vector<1x256xf32> to vector<8x256xf32>
    %123 = arith.mulf %120, %122 : vector<8x256xf32>
    %124 = arith.addf %114, %123 : vector<8x256xf32>
    %c8 = arith.constant 8 : index
    %c0_85 = arith.constant 0 : index
    %c0_86 = arith.constant 0 : index
    %125 = vector.load %arg5[%c8, %c0_85, %c0_86] : memref<9x8x20xbf16, #tpu.memory_space<vmem>>, vector<1x8x20xbf16>
    %126 = vector.shape_cast %125 : vector<1x8x20xbf16> to vector<8x20xbf16>
    %cst_87 = arith.constant dense<0.000000e+00> : vector<8x256xf32>
    %127 = tpu.matmul %126, %49, %cst_87 {dimension_numbers = #tpu.dot_dimension_numbers<[1], [0], [0], [1], [0, 0, 1, 1], [], []>} : vector<8x20xbf16>, vector<20x256xbf16>, vector<8x256xf32> -> vector<8x256xf32>
    %128 = vector.extract_strided_slice %127 {offsets = [0, 17], sizes = [8, 239], strides = [1, 1]} : vector<8x256xf32> to vector<8x239xf32>
    %129 = vector.extract_strided_slice %127 {offsets = [0, 0], sizes = [8, 17], strides = [1, 1]} : vector<8x256xf32> to vector<8x17xf32>
    %130 = tpu.concatenate %128, %129 in 1 : vector<8x239xf32>, vector<8x17xf32> -> vector<8x256xf32>
    %c8_88 = arith.constant 8 : index
    %c0_89 = arith.constant 0 : index
    %131 = vector.load %arg8[%c8_88, %c0_89] : memref<9x256xf32, #tpu.memory_space<vmem>>, vector<1x256xf32>
    %132 = vector.broadcast %131 : vector<1x256xf32> to vector<8x256xf32>
    %133 = arith.mulf %130, %132 : vector<8x256xf32>
    %134 = arith.addf %124, %133 : vector<8x256xf32>
    %c0_90 = arith.constant 0 : index
    %c1_91 = arith.constant 1 : index
    %135 = vector.load %arg9[%c0_90, %c1_91] : memref<8x4xf32, #tpu.memory_space<vmem>>, vector<8x1xf32>
    %136 = vector.broadcast %135 : vector<8x1xf32> to vector<8x256xf32>
    %137 = arith.addf %134, %136 : vector<8x256xf32>
    %cst_92 = arith.constant 0.000000e+00 : f32
    %138 = vector.broadcast %cst_92 : f32 to vector<8x256xf32>
    %139 = arith.maximumf %137, %138 : vector<8x256xf32>
    %c0_93 = arith.constant 0 : index
    %c2_94 = arith.constant 2 : index
    %140 = vector.load %arg9[%c0_93, %c2_94] : memref<8x4xf32, #tpu.memory_space<vmem>>, vector<8x1xf32>
    %141 = vector.broadcast %140 : vector<8x1xf32> to vector<8x256xf32>
    %142 = arith.mulf %139, %141 : vector<8x256xf32>
    %c0_95 = arith.constant 0 : index
    %c3_96 = arith.constant 3 : index
    %143 = vector.load %arg9[%c0_95, %c3_96] : memref<8x4xf32, #tpu.memory_space<vmem>>, vector<8x1xf32>
    %144 = vector.broadcast %143 : vector<8x1xf32> to vector<8x256xf32>
    %145 = arith.addf %142, %144 : vector<8x256xf32>
    %c0_97 = arith.constant 0 : index
    %c0_98 = arith.constant 0 : index
    %c0_99 = arith.constant 0 : index
    %146 = vector.load %arg10[%c0_97, %c0_98, %c0_99] : memref<1x8x256xf32, #tpu.memory_space<vmem>>, vector<1x8x256xf32>
    %147 = vector.shape_cast %146 : vector<1x8x256xf32> to vector<8x256xf32>
    %148 = vector.shape_cast %145 : vector<8x256xf32> to vector<1x8x256xf32>
    tpu.vector_store %arg10[%c0_97, %c0_98, %c0_99], %148 {strides = array<i32>} : memref<1x8x256xf32, #tpu.memory_space<vmem>>, vector<1x8x256xf32>,
    return
  }
  func.func @transform_0(%arg0: i32) -> (i32, i32, i32) {
    %c0_i32 = arith.constant 0 : i32
    %c0_i32_0 = arith.constant 0 : i32
    %c0_i32_1 = arith.constant 0 : i32
    return %arg0, %c0_i32, %c0_i32_0 : i32, i32, i32
  }
  func.func @transform_1(%arg0: i32) -> (i32, i32, i32) {
    %c0_i32 = arith.constant 0 : i32
    %c0_i32_0 = arith.constant 0 : i32
    %c0_i32_1 = arith.constant 0 : i32
    return %arg0, %c0_i32, %c0_i32_0 : i32, i32, i32
  }
  func.func @transform_2(%arg0: i32) -> (i32, i32, i32) {
    %c0_i32 = arith.constant 0 : i32
    %c0_i32_0 = arith.constant 0 : i32
    %c0_i32_1 = arith.constant 0 : i32
    return %arg0, %c0_i32, %c0_i32_0 : i32, i32, i32
  }
  func.func @transform_3(%arg0: i32) -> (i32, i32, i32) {
    %c0_i32 = arith.constant 0 : i32
    %c0_i32_0 = arith.constant 0 : i32
    %c0_i32_1 = arith.constant 0 : i32
    %c0_i32_2 = arith.constant 0 : i32
    return %c0_i32, %c0_i32_0, %c0_i32_1 : i32, i32, i32
  }
  func.func @transform_4(%arg0: i32) -> (i32, i32, i32) {
    %c0_i32 = arith.constant 0 : i32
    %c0_i32_0 = arith.constant 0 : i32
    %c0_i32_1 = arith.constant 0 : i32
    %c0_i32_2 = arith.constant 0 : i32
    return %c0_i32, %c0_i32_0, %c0_i32_1 : i32, i32, i32
  }
  func.func @transform_5(%arg0: i32) -> (i32, i32, i32) {
    %c0_i32 = arith.constant 0 : i32
    %c0_i32_0 = arith.constant 0 : i32
    %c0_i32_1 = arith.constant 0 : i32
    %c0_i32_2 = arith.constant 0 : i32
    return %c0_i32, %c0_i32_0, %c0_i32_1 : i32, i32, i32
  }
  func.func @transform_6(%arg0: i32) -> (i32, i32) {
    %c0_i32 = arith.constant 0 : i32
    %c0_i32_0 = arith.constant 0 : i32
    %c0_i32_1 = arith.constant 0 : i32
    return %c0_i32, %c0_i32_0 : i32, i32
  }
  func.func @transform_7(%arg0: i32) -> (i32, i32) {
    %c0_i32 = arith.constant 0 : i32
    %c0_i32_0 = arith.constant 0 : i32
    %c0_i32_1 = arith.constant 0 : i32
    return %c0_i32, %c0_i32_0 : i32, i32
  }
  func.func @transform_8(%arg0: i32) -> (i32, i32) {
    %c0_i32 = arith.constant 0 : i32
    %c0_i32_0 = arith.constant 0 : i32
    %c0_i32_1 = arith.constant 0 : i32
    return %c0_i32, %c0_i32_0 : i32, i32
  }
  func.func @transform_9(%arg0: i32) -> (i32, i32, i32) {
    %c0_i32 = arith.constant 0 : i32
    %c0_i32_0 = arith.constant 0 : i32
    %c0_i32_1 = arith.constant 0 : i32
    return %arg0, %c0_i32, %c0_i32_0 : i32, i32, i32
  }
}

</mosaic_0001>

<llo_original>
// kernel: _lambda_.1
$region0: #{_lambda_.1}
  #allocation0 [shape = 'u32[]', space=smem, size = 0x4, offset = 0x4, fixed_abs, tag = 'smem constant byte address 0x4 - core index']
  #allocation1 [shape = 'u32[144,128]{1,0:T(1,128)}', space=vmem, size = 0x12000, scoped, tag = 'internal scratch']
  %s0 = inlined_call_operand.vmem [shape: f32[2,8,64], index: 0, kind: input, shape index: {}]
  %s1 = inlined_call_operand.vmem [shape: f32[2,8,400], index: 1, kind: input, shape index: {}]
  %s2 = inlined_call_operand.vmem [shape: f32[2,4,1], index: 2, kind: input, shape index: {}]
  %s3 = inlined_call_operand.vmem [shape: bf16[4,8,8], index: 3, kind: input, shape index: {}]
  %s4 = inlined_call_operand.vmem [shape: bf16[9,8,20], index: 4, kind: input, shape index: {}]
  %s5 = inlined_call_operand.vmem [shape: bf16[4,64,256], index: 5, kind: input, shape index: {}]
  %s6 = inlined_call_operand.vmem [shape: bf16[400,256], index: 6, kind: input, shape index: {}]
  %s7 = inlined_call_operand.vmem [shape: f32[9,256], index: 7, kind: input, shape index: {}]
  %s8 = inlined_call_operand.vmem [shape: f32[8,4], index: 8, kind: input, shape index: {}]
  %s9 = inlined_call_operand.vmem [shape: f32[2,8,256], index: 9, kind: output, shape index: {}]
  %s10 = sld [smem:[#allocation0]]
  $region69: #{_lambda_.1} parent=0
    _
  %s12 = ssub.s32 1, %s10
  %s13 = scalar_select 0, %s12, %s10
  loop: start=0, step=1, limit=4
  $region2: #{_lambda_.1} parent=0 // loop_pre_header
    _
  $region3: #{_lambda_.1} parent=0 // loop_header
    %s15 = sphi 0, %s19
    %p16 = scmp.ge.s32.totalorder %s15, 4
    %s25 = sphi 0, %s27
    %s28 = sphi 0, %s25
    %s29 = sphi 0, %s28
    %s45 = sphi 0, %s29
    %s51 = sphi 0, %s53
    %s54 = sphi 0, %s51
    %s55 = sphi 0, %s54
    %s71 = sphi 0, %s55
    %s77 = sphi 0, %s79
    %s80 = sphi 0, %s77
    %s81 = sphi 0, %s80
    %s97 = sphi 0, %s81
    %s101 = sphi 0, %s101
    %s103 = sphi 0, %s101
    %s104 = sphi 0, %s103
    %s118 = sphi 0, %s104
    %s122 = sphi 0, %s122
    %s124 = sphi 0, %s122
    %s125 = sphi 0, %s124
    %s139 = sphi 0, %s125
    %s143 = sphi 0, %s143
    %s145 = sphi 0, %s143
    %s146 = sphi 0, %s145
    %s160 = sphi 0, %s146
    %s164 = sphi 0, %s164
    %s166 = sphi 0, %s164
    %s167 = sphi 0, %s166
    %s181 = sphi 0, %s167
    %s185 = sphi 0, %s185
    %s187 = sphi 0, %s185
    %s188 = sphi 0, %s187
    %s202 = sphi 0, %s188
    %s206 = sphi 0, %s206
    %s208 = sphi 0, %s206
    %s209 = sphi 0, %s208
    %s223 = sphi 0, %s209
    %s229 = sphi 0, %s231
    %s232 = sphi 0, %s229
    %s233 = sphi 0, %s232
    %s249 = sphi 0, %s233
  $region4: #{_lambda_.1} parent=0 // loop_header_branch
    %18 = sbr.rel (%p16) target = $region8
  $region5: #{_lambda_.1} parent=0 // loop_body
    %s20 = ssub.s32 %s15, 1
    %s21 = ssub.s32 %s15, 2
    %s22 = sadd.s32 %s15, 1
    %s23 = ssub.s32 %s15, %s22
    %p24 = scmp.eq.s32.totalorder %s23, 0
    %s26 = sadd.s32 %s25, 1
    %s27 = scalar_select %p24, %s25, %s26
    %p30 = pneg %p24
    %p31 = scmp.eq.s32.totalorder %s15, 1
    %p32 = por %p30, %p31
    %p33 = scmp.ne.s32.totalorder %s25, %s28
    %p34 = scmp.eq.s32.totalorder %s15, 0
    %p35 = por %p33, %p34
    %p36 = scmp.ne.s32.totalorder %s25, %s28
    %p37 = scmp.eq.s32.totalorder %s20, 1
    %p38 = por %p36, %p37
    %p39 = scmp.ne.s32.totalorder %s28, %s29
    %p40 = scmp.eq.s32.totalorder %s20, 0
    %p41 = por %p39, %p40
    %p42 = scmp.ne.s32.totalorder %s28, %s29
    %p43 = scmp.eq.s32.totalorder %s21, 1
    %p44 = por %p42, %p43
    %p46 = scmp.ne.s32.totalorder %s29, %s45
    %p47 = scmp.eq.s32.totalorder %s21, 0
    %p48 = por %p46, %p47
    %s49 = ssub.s32 %s15, %s22
    %p50 = scmp.eq.s32.totalorder %s49, 0
    %s52 = sadd.s32 %s51, 1
    %s53 = scalar_select %p50, %s51, %s52
    %p56 = pneg %p50
    %p57 = scmp.eq.s32.totalorder %s15, 1
    %p58 = por %p56, %p57
    %p59 = scmp.ne.s32.totalorder %s51, %s54
    %p60 = scmp.eq.s32.totalorder %s15, 0
    %p61 = por %p59, %p60
    %p62 = scmp.ne.s32.totalorder %s51, %s54
    %p63 = scmp.eq.s32.totalorder %s20, 1
    %p64 = por %p62, %p63
    %p65 = scmp.ne.s32.totalorder %s54, %s55
    %p66 = scmp.eq.s32.totalorder %s20, 0
    %p67 = por %p65, %p66
    %p68 = scmp.ne.s32.totalorder %s54, %s55
    %p69 = scmp.eq.s32.totalorder %s21, 1
    %p70 = por %p68, %p69
    %p72 = scmp.ne.s32.totalorder %s55, %s71
    %p73 = scmp.eq.s32.totalorder %s21, 0
    %p74 = por %p72, %p73
    %s75 = ssub.s32 %s15, %s22
    %p76 = scmp.eq.s32.totalorder %s75, 0
    %s78 = sadd.s32 %s77, 1
    %s79 = scalar_select %p76, %s77, %s78
    %p82 = pneg %p76
    %p83 = scmp.eq.s32.totalorder %s15, 1
    %p84 = por %p82, %p83
    %p85 = scmp.ne.s32.totalorder %s77, %s80
    %p86 = scmp.eq.s32.totalorder %s15, 0
    %p87 = por %p85, %p86
    %p88 = scmp.ne.s32.totalorder %s77, %s80
    %p89 = scmp.eq.s32.totalorder %s20, 1
    %p90 = por %p88, %p89
    %p91 = scmp.ne.s32.totalorder %s80, %s81
    %p92 = scmp.eq.s32.totalorder %s20, 0
    %p93 = por %p91, %p92
    %p94 = scmp.ne.s32.totalorder %s80, %s81
    %p95 = scmp.eq.s32.totalorder %s21, 1
    %p96 = por %p94, %p95
    %p98 = scmp.ne.s32.totalorder %s81, %s97
    %p99 = scmp.eq.s32.totalorder %s21, 0
    %p100 = por %p98, %p99
    %s102 = sadd.s32 %s101, 1
    %p105 = scmp.eq.s32.totalorder %s15, 1
    %p106 = scmp.ne.s32.totalorder %s101, %s103
    %p107 = scmp.eq.s32.totalorder %s15, 0
    %p108 = por %p106, %p107
    %p109 = scmp.ne.s32.totalorder %s101, %s103
    %p110 = scmp.eq.s32.totalorder %s20, 1
    %p111 = por %p109, %p110
    %p112 = scmp.ne.s32.totalorder %s103, %s104
    %p113 = scmp.eq.s32.totalorder %s20, 0
    %p114 = por %p112, %p113
    %p115 = scmp.ne.s32.totalorder %s103, %s104
    %p116 = scmp.eq.s32.totalorder %s21, 1
    %p117 = por %p115, %p116
    %p119 = scmp.ne.s32.totalorder %s104, %s118
    %p120 = scmp.eq.s32.totalorder %s21, 0
    %p121 = por %p119, %p120
    %s123 = sadd.s32 %s122, 1
    %p126 = scmp.eq.s32.totalorder %s15, 1
    %p127 = scmp.ne.s32.totalorder %s122, %s124
    %p128 = scmp.eq.s32.totalorder %s15, 0
    %p129 = por %p127, %p128
    %p130 = scmp.ne.s32.totalorder %s122, %s124
    %p131 = scmp.eq.s32.totalorder %s20, 1
    %p132 = por %p130, %p131
    %p133 = scmp.ne.s32.totalorder %s124, %s125
    %p134 = scmp.eq.s32.totalorder %s20, 0
    %p135 = por %p133, %p134
    %p136 = scmp.ne.s32.totalorder %s124, %s125
    %p137 = scmp.eq.s32.totalorder %s21, 1
    %p138 = por %p136, %p137
    %p140 = scmp.ne.s32.totalorder %s125, %s139
    %p141 = scmp.eq.s32.totalorder %s21, 0
    %p142 = por %p140, %p141
    %s144 = sadd.s32 %s143, 1
    %p147 = scmp.eq.s32.totalorder %s15, 1
    %p148 = scmp.ne.s32.totalorder %s143, %s145
    %p149 = scmp.eq.s32.totalorder %s15, 0
    %p150 = por %p148, %p149
    %p151 = scmp.ne.s32.totalorder %s143, %s145
    %p152 = scmp.eq.s32.totalorder %s20, 1
    %p153 = por %p151, %p152
    %p154 = scmp.ne.s32.totalorder %s145, %s146
    %p155 = scmp.eq.s32.totalorder %s20, 0
    %p156 = por %p154, %p155
    %p157 = scmp.ne.s32.totalorder %s145, %s146
    %p158 = scmp.eq.s32.totalorder %s21, 1
    %p159 = por %p157, %p158
    %p161 = scmp.ne.s32.totalorder %s146, %s160
    %p162 = scmp.eq.s32.totalorder %s21, 0
    %p163 = por %p161, %p162
    %s165 = sadd.s32 %s164, 1
    %p168 = scmp.eq.s32.totalorder %s15, 1
    %p169 = scmp.ne.s32.totalorder %s164, %s166
    %p170 = scmp.eq.s32.totalorder %s15, 0
    %p171 = por %p169, %p170
    %p172 = scmp.ne.s32.totalorder %s164, %s166
    %p173 = scmp.eq.s32.totalorder %s20, 1
    %p174 = por %p172, %p173
    %p175 = scmp.ne.s32.totalorder %s166, %s167
    %p176 = scmp.eq.s32.totalorder %s20, 0
    %p177 = por %p175, %p176
    %p178 = scmp.ne.s32.totalorder %s166, %s167
    %p179 = scmp.eq.s32.totalorder %s21, 1
    %p180 = por %p178, %p179
    %p182 = scmp.ne.s32.totalorder %s167, %s181
    %p183 = scmp.eq.s32.totalorder %s21, 0
    %p184 = por %p182, %p183
    %s186 = sadd.s32 %s185, 1
    %p189 = scmp.eq.s32.totalorder %s15, 1
    %p190 = scmp.ne.s32.totalorder %s185, %s187
    %p191 = scmp.eq.s32.totalorder %s15, 0
    %p192 = por %p190, %p191
    %p193 = scmp.ne.s32.totalorder %s185, %s187
    %p194 = scmp.eq.s32.totalorder %s20, 1
    %p195 = por %p193, %p194
    %p196 = scmp.ne.s32.totalorder %s187, %s188
    %p197 = scmp.eq.s32.totalorder %s20, 0
    %p198 = por %p196, %p197
    %p199 = scmp.ne.s32.totalorder %s187, %s188
    %p200 = scmp.eq.s32.totalorder %s21, 1
    %p201 = por %p199, %p200
    %p203 = scmp.ne.s32.totalorder %s188, %s202
    %p204 = scmp.eq.s32.totalorder %s21, 0
    %p205 = por %p203, %p204
    %s207 = sadd.s32 %s206, 1
    %p210 = scmp.eq.s32.totalorder %s15, 1
    %p211 = scmp.ne.s32.totalorder %s206, %s208
    %p212 = scmp.eq.s32.totalorder %s15, 0
    %p213 = por %p211, %p212
    %p214 = scmp.ne.s32.totalorder %s206, %s208
    %p215 = scmp.eq.s32.totalorder %s20, 1
    %p216 = por %p214, %p215
    %p217 = scmp.ne.s32.totalorder %s208, %s209
    %p218 = scmp.eq.s32.totalorder %s20, 0
    %p219 = por %p217, %p218
    %p220 = scmp.ne.s32.totalorder %s208, %s209
    %p221 = scmp.eq.s32.totalorder %s21, 1
    %p222 = por %p220, %p221
    %p224 = scmp.ne.s32.totalorder %s209, %s223
    %p225 = scmp.eq.s32.totalorder %s21, 0
    %p226 = por %p224, %p225
    %s227 = ssub.s32 %s15, %s22
    %p228 = scmp.eq.s32.totalorder %s227, 0
    %s230 = sadd.s32 %s229, 1
    %s231 = scalar_select %p228, %s229, %s230
    %p234 = pneg %p228
    %p235 = scmp.eq.s32.totalorder %s15, 1
    %p236 = por %p234, %p235
    %p237 = scmp.ne.s32.totalorder %s229, %s232
    %p238 = scmp.eq.s32.totalorder %s15, 0
    %p239 = por %p237, %p238
    %p240 = scmp.ne.s32.totalorder %s229, %s232
    %p241 = scmp.eq.s32.totalorder %s20, 1
    %p242 = por %p240, %p241
    %p243 = scmp.ne.s32.totalorder %s232, %s233
    %p244 = scmp.eq.s32.totalorder %s20, 0
    %p245 = por %p243, %p244
    %p246 = scmp.ne.s32.totalorder %s232, %s233
    %p247 = scmp.eq.s32.totalorder %s21, 1
    %p248 = por %p246, %p247
    %p250 = scmp.ne.s32.totalorder %s233, %s249
    %p251 = scmp.eq.s32.totalorder %s21, 0
    %p252 = por %p250, %p251
    %p253 = scmp.le.s32.totalorder 1, %s15
    %p254 = scmp.lt.s32.totalorder %s15, 3
    %p255 = pnand %p253, %p254
    %p256 = pneg %p255
    // Predicated region
    $region9: #{_lambda_.1} parent=5 // pred_check
      _
    $region10: #{_lambda_.1} parent=5 // pred_check_branch
      %258 = sbr.rel (%p255) target = $region12
    $region11: #{_lambda_.1} parent=5 // pred_region
      %s259 = ssub.s32 %s15, 1
      // Predicated region
      $region13: #{_lambda_.1} parent=11 // pred_check
        %p260 = pneg %p114
      $region14: #{_lambda_.1} parent=11 // pred_check_branch
        %262 = sbr.rel (%p260) target = $region16
      $region15: #{_lambda_.1} parent=11 // pred_region
        _
      $region16: #{_lambda_.1} parent=11 // pred_fallthru
        _
      // Predicated region
      $region17: #{_lambda_.1} parent=11 // pred_check
        %p263 = pneg %p135
      $region18: #{_lambda_.1} parent=11 // pred_check_branch
        %265 = sbr.rel (%p263) target = $region20
      $region19: #{_lambda_.1} parent=11 // pred_region
        _
      $region20: #{_lambda_.1} parent=11 // pred_fallthru
        _
      // Predicated region
      $region21: #{_lambda_.1} parent=11 // pred_check
        %p266 = pneg %p156
      $region22: #{_lambda_.1} parent=11 // pred_check_branch
        %268 = sbr.rel (%p266) target = $region24
      $region23: #{_lambda_.1} parent=11 // pred_region
        _
      $region24: #{_lambda_.1} parent=11 // pred_fallthru
        _
      // Predicated region
      $region25: #{_lambda_.1} parent=11 // pred_check
        %p269 = pneg %p177
      $region26: #{_lambda_.1} parent=11 // pred_check_branch
        %271 = sbr.rel (%p269) target = $region28
      $region27: #{_lambda_.1} parent=11 // pred_region
        _
      $region28: #{_lambda_.1} parent=11 // pred_fallthru
        _
      // Predicated region
      $region29: #{_lambda_.1} parent=11 // pred_check
        %p272 = pneg %p198
      $region30: #{_lambda_.1} parent=11 // pred_check_branch
        %274 = sbr.rel (%p272) target = $region32
      $region31: #{_lambda_.1} parent=11 // pred_region
        _
      $region32: #{_lambda_.1} parent=11 // pred_fallthru
        _
      // Predicated region
      $region33: #{_lambda_.1} parent=11 // pred_check
        %p275 = pneg %p219
      $region34: #{_lambda_.1} parent=11 // pred_check_branch
        %277 = sbr.rel (%p275) target = $region36
      $region35: #{_lambda_.1} parent=11 // pred_region
        _
      $region36: #{_lambda_.1} parent=11 // pred_fallthru
        _
    $region12: #{_lambda_.1} parent=5 // pred_fallthru
      _
    %p278 = scmp.lt.s32.totalorder %s15, 2
    // Predicated region
    $region37: #{_lambda_.1} parent=5 // pred_check
      %p279 = pneg %p278
    $region38: #{_lambda_.1} parent=5 // pred_check_branch
      %281 = sbr.rel (%p279) target = $region40
    $region39: #{_lambda_.1} parent=5 // pred_region
      // Predicated region
      $region41: #{_lambda_.1} parent=39 // pred_check
        %p282 = pneg %p35
      $region42: #{_lambda_.1} parent=39 // pred_check_branch
        %284 = sbr.rel (%p282) target = $region44
      $region43: #{_lambda_.1} parent=39 // pred_region
        %p285 = scmp.lt.s32.totalorder %s15, 1
        %s286 = scalar_select %p285, %s15, 1
        %s287 = smul.addr %s286, 8
        %s288 = scalar_lea.vmem %s0, %s287
      $region44: #{_lambda_.1} parent=39 // pred_fallthru
        _
      // Predicated region
      $region45: #{_lambda_.1} parent=39 // pred_check
        %p289 = pneg %p61
      $region46: #{_lambda_.1} parent=39 // pred_check_branch
        %291 = sbr.rel (%p289) target = $region48
      $region47: #{_lambda_.1} parent=39 // pred_region
        %p292 = scmp.lt.s32.totalorder %s15, 1
        %s293 = scalar_select %p292, %s15, 1
        %s294 = smul.addr %s293, 4
        %s295 = smul.addr %s294, 8
        %s296 = scalar_lea.vmem %s1, %s295
      $region48: #{_lambda_.1} parent=39 // pred_fallthru
        _
      // Predicated region
      $region49: #{_lambda_.1} parent=39 // pred_check
        %p297 = pneg %p87
      $region50: #{_lambda_.1} parent=39 // pred_check_branch
        %299 = sbr.rel (%p297) target = $region52
      $region51: #{_lambda_.1} parent=39 // pred_region
        %p300 = scmp.lt.s32.totalorder %s15, 1
        %s301 = scalar_select %p300, %s15, 1
        %s302 = smul.addr %s301, 4
        %s303 = scalar_lea.vmem %s2, %s302
      $region52: #{_lambda_.1} parent=39 // pred_fallthru
        _
    $region40: #{_lambda_.1} parent=5 // pred_fallthru
      _
    %p304 = scmp.le.s32.totalorder 1, %s15
    %p305 = scmp.lt.s32.totalorder %s15, 3
    %p306 = pnand %p304, %p305
    %p307 = pneg %p306
    // Predicated region
    $region53: #{_lambda_.1} parent=5 // pred_check
      _
    $region54: #{_lambda_.1} parent=5 // pred_check_branch
      %309 = sbr.rel (%p306) target = $region56
    $region55: #{_lambda_.1} parent=5 // pred_region
      %s310 = ssub.s32 %s15, 1
      %p311 = scmp.lt.s32.totalorder %s20, 1
      %s312 = scalar_select %p311, %s20, 1
      %s313 = smul.addr %s312, 8
      %s314 = scalar_lea.vmem %s0, %s313
      %p315 = pneg %p41
      %p316 = pneg %p38
      %p317 = scmp.lt.s32.totalorder %s20, 1
      %s318 = scalar_select %p317, %s20, 1
      %s319 = smul.addr %s318, 4
      %s320 = smul.addr %s319, 8
      %s321 = scalar_lea.vmem %s1, %s320
      %p322 = pneg %p67
      %p323 = pneg %p64
      %p324 = scmp.lt.s32.totalorder %s20, 1
      %s325 = scalar_select %p324, %s20, 1
      %s326 = smul.addr %s325, 4
      %s327 = scalar_lea.vmem %s2, %s326
      %p328 = pneg %p93
      %p329 = pneg %p90
      %p330 = pneg %p114
      %p331 = pneg %p111
      %p332 = pneg %p135
      %p333 = pneg %p132
      %p334 = pneg %p156
      %p335 = pneg %p153
      %p336 = pneg %p177
      %p337 = pneg %p174
      %p338 = pneg %p198
      %p339 = pneg %p195
      %p340 = pneg %p219
      %p341 = pneg %p216
      %p342 = pneg %p245
      %p343 = pneg %p242
      %p344 = scmp.lt.s32.totalorder %s20, 1
      %s345 = scalar_select %p344, %s20, 1
      %s346 = smul.addr %s345, 2
      %s347 = smul.addr %s346, 8
      %s348 = scalar_lea.vmem %s9, %s347
      %p349 = scmp.lt.s32.totalorder %s20, 1
      %s350 = scalar_select %p349, %s20, 1
      %s351 = smul.addr %s350, 8
      %s352 = scalar_lea.vmem %s0, %s351
      %p353 = scmp.lt.s32.totalorder %s20, 1
      %s354 = scalar_select %p353, %s20, 1
      %s355 = smul.addr %s354, 4
      %s356 = smul.addr %s355, 8
      %s357 = scalar_lea.vmem %s1, %s356
      %p358 = scmp.lt.s32.totalorder %s20, 1
      %s359 = scalar_select %p358, %s20, 1
      %s360 = smul.addr %s359, 4
      %s361 = scalar_lea.vmem %s2, %s360
      %p362 = scmp.lt.s32.totalorder %s20, 1
      %s363 = scalar_select %p362, %s20, 1
      %s364 = smul.addr %s363, 2
      %s365 = smul.addr %s364, 8
      %s366 = scalar_lea.vmem %s9, %s365
      %v368 = vld [vmem:[%s352] sm:$0xff]
      %v369 = vpack.c.bf16 %v368, %v368
      %v370 = vld [vmem:[%s5] sm:$0xff]
      %v371 = vld [vmem:[%s5 + $0x8] sm:$0xff]
      %v372 = vld [vmem:[%s5 + $0x10] sm:$0xff]
      %v373 = vld [vmem:[%s5 + $0x18] sm:$0xff]
      %v374 = vld [vmem:[%s5 + $0x20] sm:$0xff]
      %v375 = vld [vmem:[%s5 + $0x28] sm:$0xff]
      %v376 = vld [vmem:[%s5 + $0x30] sm:$0xff]
      %v377 = vld [vmem:[%s5 + $0x38] sm:$0xff]
      %v386 = vunpack.c.l.b16 %v370
      %v387 = vunpack.c.h.b16 %v370
      %v388 = vunpack.c.l.b16 %v371
      %v389 = vunpack.c.h.b16 %v371
      %v390 = vunpack.c.l.b16 %v372
      %v391 = vunpack.c.h.b16 %v372
      %v392 = vunpack.c.l.b16 %v373
      %v393 = vunpack.c.h.b16 %v373
      %v394 = vunpack.c.l.b16 %v374
      %v395 = vunpack.c.h.b16 %v374
      %v396 = vunpack.c.l.b16 %v375
      %v397 = vunpack.c.h.b16 %v375
      %v398 = vunpack.c.l.b16 %v376
      %v399 = vunpack.c.h.b16 %v376
      %v400 = vunpack.c.l.b16 %v377
      %v401 = vunpack.c.h.b16 %v377
      %v402 = vpack.c.b16 %v388, %v386
      %v403 = vpack.c.b16 %v389, %v387
      %v404 = vpack.c.b16 %v392, %v390
      %v405 = vpack.c.b16 %v393, %v391
      %v406 = vpack.c.b16 %v396, %v394
      %v407 = vpack.c.b16 %v397, %v395
      %v408 = vpack.c.b16 %v400, %v398
      %v409 = vpack.c.b16 %v401, %v399
      %vm418 = vcmask 523264
      %v420 = vsel %vm418, %v369, 0
      %422 = vmatprep.subr.bf16.mxu0 %v403
      %423 = vmatpush1.bf16.msra.mxu0 %v402
      %424 = vmatprep.subr.bf16.mxu0 %v405
      %425 = vmatpush1.bf16.msra.mxu0 %v404
      %426 = vmatprep.subr.bf16.mxu0 %v407
      %427 = vmatpush1.bf16.msra.mxu0 %v406
      %428 = vmatprep.subr.bf16.mxu0 %v409
      %429 = vmatpush1.bf16.msra.mxu0 %v408
      %430 = vmatprep.subr.bf16.mxu0 0
      %431 = vmatpush1.bf16.msra.mxu0 0
      %432 = vmatprep.subr.bf16.mxu0 0
      %433 = vmatpush1.bf16.msra.mxu0 0
      %434 = vmatprep.subr.bf16.mxu0 0
      %435 = vmatpush1.bf16.msra.mxu0 0
      %436 = vmatprep.subr.bf16.mxu0 0
      %437 = vmatpush1.bf16.msra.mxu0 0
      %438 = vmatprep.subr.bf16.mxu0 0
      %439 = vmatpush1.bf16.msra.mxu0 0
      %440 = vmatprep.subr.bf16.mxu0 0
      %441 = vmatpush1.bf16.msra.mxu0 0
      %442 = vmatprep.subr.bf16.mxu0 0
      %443 = vmatpush1.bf16.msra.mxu0 0
      %444 = vmatprep.subr.bf16.mxu0 0
      %445 = vmatpush1.bf16.msra.mxu0 0
      %446 = vmatprep.subr.bf16.mxu0 0
      %447 = vmatpush1.bf16.msra.mxu0 0
      %448 = vmatprep.subr.bf16.mxu0 0
      %449 = vmatpush1.bf16.msra.mxu0 0
      %450 = vmatprep.subr.bf16.mxu0 0
      %451 = vmatpush1.bf16.msra.mxu0 0
      %452 = vmatprep.subr.bf16.mxu0 0
      %453 = vmatpush1.bf16.msra.mxu0 0
      %454 = vmatprep.mubr.bf16.mxu0 0
      %455 = vmatmul.mubr.bf16.gmra.mrb[0].mxu0 %v420
      %v456 = vpop.f32.mrb[0].mxu0
      %v457 = vadd.f32 0.0, %v456
      %v458 = vpop.f32.mrb[0].mxu0
      %v459 = vadd.f32 0.0, %v458
      %v460 = vpop.f32.mrb[0].mxu0
      %v461 = vpop.f32.mrb[0].mxu0
      %462 = vdwg.mxu0
      %v463 = vld [vmem:[%s3] sm:$0xf]
      %v464 = vpack.c.bf16 %v457, %v457
      %v465 = vpack.c.bf16 %v459, %v459
      %s466 = scalar_lea.vmem %s5, 64
      %v467 = vld [vmem:[%s466] sm:$0xff]
      %v468 = vld [vmem:[%s466 + $0x8] sm:$0xff]
      %v469 = vld [vmem:[%s466 + $0x10] sm:$0xff]
      %v470 = vld [vmem:[%s466 + $0x18] sm:$0xff]
      %v471 = vld [vmem:[%s466 + $0x20] sm:$0xff]
      %v472 = vld [vmem:[%s466 + $0x28] sm:$0xff]
      %v473 = vld [vmem:[%s466 + $0x30] sm:$0xff]
      %v474 = vld [vmem:[%s466 + $0x38] sm:$0xff]
      %v483 = vunpack.c.l.b16 %v467
      %v484 = vunpack.c.h.b16 %v467
      %v485 = vunpack.c.l.b16 %v468
      %v486 = vunpack.c.h.b16 %v468
      %v487 = vunpack.c.l.b16 %v469
      %v488 = vunpack.c.h.b16 %v469
      %v489 = vunpack.c.l.b16 %v470
      %v490 = vunpack.c.h.b16 %v470
      %v491 = vunpack.c.l.b16 %v471
      %v492 = vunpack.c.h.b16 %v471
      %v493 = vunpack.c.l.b16 %v472
      %v494 = vunpack.c.h.b16 %v472
      %v495 = vunpack.c.l.b16 %v473
      %v496 = vunpack.c.h.b16 %v473
      %v497 = vunpack.c.l.b16 %v474
      %v498 = vunpack.c.h.b16 %v474
      %v499 = vpack.c.b16 %v485, %v483
      %v500 = vpack.c.b16 %v486, %v484
      %v501 = vpack.c.b16 %v489, %v487
      %v502 = vpack.c.b16 %v490, %v488
      %v503 = vpack.c.b16 %v493, %v491
      %v504 = vpack.c.b16 %v494, %v492
      %v505 = vpack.c.b16 %v497, %v495
      %v506 = vpack.c.b16 %v498, %v496
      %515 = vmatprep.subr.bf16.mxu0 %v500
      %516 = vmatpush1.bf16.msra.mxu0 %v499
      %517 = vmatprep.subr.bf16.mxu0 %v502
      %518 = vmatpush1.bf16.msra.mxu0 %v501
      %519 = vmatprep.subr.bf16.mxu0 %v504
      %520 = vmatpush1.bf16.msra.mxu0 %v503
      %521 = vmatprep.subr.bf16.mxu0 %v506
      %522 = vmatpush1.bf16.msra.mxu0 %v505
      %523 = vmatprep.subr.bf16.mxu0 0
      %524 = vmatpush1.bf16.msra.mxu0 0
      %525 = vmatprep.subr.bf16.mxu0 0
      %526 = vmatpush1.bf16.msra.mxu0 0
      %527 = vmatprep.subr.bf16.mxu0 0
      %528 = vmatpush1.bf16.msra.mxu0 0
      %529 = vmatprep.subr.bf16.mxu0 0
      %530 = vmatpush1.bf16.msra.mxu0 0
      %531 = vmatprep.subr.bf16.mxu0 0
      %532 = vmatpush1.bf16.msra.mxu0 0
      %533 = vmatprep.subr.bf16.mxu0 0
      %534 = vmatpush1.bf16.msra.mxu0 0
      %535 = vmatprep.subr.bf16.mxu0 0
      %536 = vmatpush1.bf16.msra.mxu0 0
      %537 = vmatprep.subr.bf16.mxu0 0
      %538 = vmatpush1.bf16.msra.mxu0 0
      %539 = vmatprep.subr.bf16.mxu0 0
      %540 = vmatpush1.bf16.msra.mxu0 0
      %541 = vmatprep.subr.bf16.mxu0 0
      %542 = vmatpush1.bf16.msra.mxu0 0
      %543 = vmatprep.subr.bf16.mxu0 0
      %544 = vmatpush1.bf16.msra.mxu0 0
      %545 = vmatprep.subr.bf16.mxu0 0
      %546 = vmatpush1.bf16.msra.mxu0 0
      %547 = vmatprep.mubr.bf16.mxu0 0
      %548 = vmatmul.mubr.bf16.gmra.mrb[0].mxu0 %v420
      %v549 = vpop.f32.mrb[0].mxu0
      %v550 = vadd.f32 0.0, %v549
      %v551 = vpop.f32.mrb[0].mxu0
      %v552 = vadd.f32 0.0, %v551
      %v553 = vpop.f32.mrb[0].mxu0
      %v554 = vpop.f32.mrb[0].mxu0
      %555 = vdwg.mxu0
      %s556 = scalar_lea.vmem %s3, 4
      %v557 = vld [vmem:[%s556] sm:$0xf]
      %v558 = vpack.c.bf16 %v550, %v550
      %v559 = vpack.c.bf16 %v552, %v552
      %vm560 = vcmask 64512
      %v562 = vsel %vm560, %v557, 0
      %vm564 = vcmask 1043456
      %v566 = vsel %vm564, %v558, 0
      %v569 = vsel %vm564, %v559, 0
      %571 = vmatprep.subr.bf16.mxu0 %v569
      %572 = vmatpush1.bf16.msra.mxu0 %v566
      %573 = vmatprep.subr.bf16.mxu0 0
      %574 = vmatpush1.bf16.msra.mxu0 0
      %575 = vmatprep.subr.bf16.mxu0 0
      %576 = vmatpush1.bf16.msra.mxu0 0
      %577 = vmatprep.subr.bf16.mxu0 0
      %578 = vmatpush1.bf16.msra.mxu0 0
      %579 = vmatprep.subr.bf16.mxu0 0
      %580 = vmatpush1.bf16.msra.mxu0 0
      %581 = vmatprep.subr.bf16.mxu0 0
      %582 = vmatpush1.bf16.msra.mxu0 0
      %583 = vmatprep.subr.bf16.mxu0 0
      %584 = vmatpush1.bf16.msra.mxu0 0
      %585 = vmatprep.subr.bf16.mxu0 0
      %586 = vmatpush1.bf16.msra.mxu0 0
      %587 = vmatprep.subr.bf16.mxu0 0
      %588 = vmatpush1.bf16.msra.mxu0 0
      %589 = vmatprep.subr.bf16.mxu0 0
      %590 = vmatpush1.bf16.msra.mxu0 0
      %591 = vmatprep.subr.bf16.mxu0 0
      %592 = vmatpush1.bf16.msra.mxu0 0
      %593 = vmatprep.subr.bf16.mxu0 0
      %594 = vmatpush1.bf16.msra.mxu0 0
      %595 = vmatprep.subr.bf16.mxu0 0
      %596 = vmatpush1.bf16.msra.mxu0 0
      %597 = vmatprep.subr.bf16.mxu0 0
      %598 = vmatpush1.bf16.msra.mxu0 0
      %599 = vmatprep.subr.bf16.mxu0 0
      %600 = vmatpush1.bf16.msra.mxu0 0
      %601 = vmatprep.subr.bf16.mxu0 0
      %602 = vmatpush1.bf16.msra.mxu0 0
      %603 = vmatprep.mubr.bf16.mxu0 0
      %604 = vmatmul.mubr.bf16.gmra.mrb[0].mxu0 %v562
      %v605 = vpop.f32.mrb[0].mxu0
      %v606 = vadd.f32 0.0, %v605
      %v607 = vpop.f32.mrb[0].mxu0
      %v608 = vadd.f32 0.0, %v607
      %v609 = vpop.f32.mrb[0].mxu0
      %v610 = vpop.f32.mrb[0].mxu0
      %611 = vdwg.mxu0
      %v613 = vsel %vm560, %v463, 0
      %v616 = vsel %vm564, %v464, 0
      %v619 = vsel %vm564, %v465, 0
      %621 = vmatprep.subr.bf16.mxu0 %v619
      %622 = vmatpush1.bf16.msra.mxu0 %v616
      %623 = vmatprep.subr.bf16.mxu0 0
      %624 = vmatpush1.bf16.msra.mxu0 0
      %625 = vmatprep.subr.bf16.mxu0 0
      %626 = vmatpush1.bf16.msra.mxu0 0
      %627 = vmatprep.subr.bf16.mxu0 0
      %628 = vmatpush1.bf16.msra.mxu0 0
      %629 = vmatprep.subr.bf16.mxu0 0
      %630 = vmatpush1.bf16.msra.mxu0 0
      %631 = vmatprep.subr.bf16.mxu0 0
      %632 = vmatpush1.bf16.msra.mxu0 0
      %633 = vmatprep.subr.bf16.mxu0 0
      %634 = vmatpush1.bf16.msra.mxu0 0
      %635 = vmatprep.subr.bf16.mxu0 0
      %636 = vmatpush1.bf16.msra.mxu0 0
      %637 = vmatprep.subr.bf16.mxu0 0
      %638 = vmatpush1.bf16.msra.mxu0 0
      %639 = vmatprep.subr.bf16.mxu0 0
      %640 = vmatpush1.bf16.msra.mxu0 0
      %641 = vmatprep.subr.bf16.mxu0 0
      %642 = vmatpush1.bf16.msra.mxu0 0
      %643 = vmatprep.subr.bf16.mxu0 0
      %644 = vmatpush1.bf16.msra.mxu0 0
      %645 = vmatprep.subr.bf16.mxu0 0
      %646 = vmatpush1.bf16.msra.mxu0 0
      %647 = vmatprep.subr.bf16.mxu0 0
      %648 = vmatpush1.bf16.msra.mxu0 0
      %649 = vmatprep.subr.bf16.mxu0 0
      %650 = vmatpush1.bf16.msra.mxu0 0
      %651 = vmatprep.subr.bf16.mxu0 0
      %652 = vmatpush1.bf16.msra.mxu0 0
      %653 = vmatprep.mubr.bf16.mxu0 0
      %654 = vmatmul.mubr.bf16.gmra.mrb[0].mxu0 %v613
      %v655 = vpop.f32.mrb[0].mxu0
      %v656 = vadd.f32 %v606, %v655
      %v657 = vpop.f32.mrb[0].mxu0
      %v658 = vadd.f32 %v608, %v657
      %v659 = vpop.f32.mrb[0].mxu0
      %v660 = vpop.f32.mrb[0].mxu0
      %661 = vdwg.mxu0
      %s662 = scalar_lea.vmem %s5, 128
      %v663 = vld [vmem:[%s662] sm:$0xff]
      %v664 = vld [vmem:[%s662 + $0x8] sm:$0xff]
      %v665 = vld [vmem:[%s662 + $0x10] sm:$0xff]
      %v666 = vld [vmem:[%s662 + $0x18] sm:$0xff]
      %v667 = vld [vmem:[%s662 + $0x20] sm:$0xff]
      %v668 = vld [vmem:[%s662 + $0x28] sm:$0xff]
      %v669 = vld [vmem:[%s662 + $0x30] sm:$0xff]
      %v670 = vld [vmem:[%s662 + $0x38] sm:$0xff]
      %v679 = vunpack.c.l.b16 %v663
      %v680 = vunpack.c.h.b16 %v663
      %v681 = vunpack.c.l.b16 %v664
      %v682 = vunpack.c.h.b16 %v664
      %v683 = vunpack.c.l.b16 %v665
      %v684 = vunpack.c.h.b16 %v665
      %v685 = vunpack.c.l.b16 %v666
      %v686 = vunpack.c.h.b16 %v666
      %v687 = vunpack.c.l.b16 %v667
      %v688 = vunpack.c.h.b16 %v667
      %v689 = vunpack.c.l.b16 %v668
      %v690 = vunpack.c.h.b16 %v668
      %v691 = vunpack.c.l.b16 %v669
      %v692 = vunpack.c.h.b16 %v669
      %v693 = vunpack.c.l.b16 %v670
      %v694 = vunpack.c.h.b16 %v670
      %v695 = vpack.c.b16 %v681, %v679
      %v696 = vpack.c.b16 %v682, %v680
      %v697 = vpack.c.b16 %v685, %v683
      %v698 = vpack.c.b16 %v686, %v684
      %v699 = vpack.c.b16 %v689, %v687
      %v700 = vpack.c.b16 %v690, %v688
      %v701 = vpack.c.b16 %v693, %v691
      %v702 = vpack.c.b16 %v694, %v692
      %711 = vmatprep.subr.bf16.mxu0 %v696
      %712 = vmatpush1.bf16.msra.mxu0 %v695
      %713 = vmatprep.subr.bf16.mxu0 %v698
      %714 = vmatpush1.bf16.msra.mxu0 %v697
      %715 = vmatprep.subr.bf16.mxu0 %v700
      %716 = vmatpush1.bf16.msra.mxu0 %v699
      %717 = vmatprep.subr.bf16.mxu0 %v702
      %718 = vmatpush1.bf16.msra.mxu0 %v701
      %719 = vmatprep.subr.bf16.mxu0 0
      %720 = vmatpush1.bf16.msra.mxu0 0
      %721 = vmatprep.subr.bf16.mxu0 0
      %722 = vmatpush1.bf16.msra.mxu0 0
      %723 = vmatprep.subr.bf16.mxu0 0
      %724 = vmatpush1.bf16.msra.mxu0 0
      %725 = vmatprep.subr.bf16.mxu0 0
      %726 = vmatpush1.bf16.msra.mxu0 0
      %727 = vmatprep.subr.bf16.mxu0 0
      %728 = vmatpush1.bf16.msra.mxu0 0
      %729 = vmatprep.subr.bf16.mxu0 0
      %730 = vmatpush1.bf16.msra.mxu0 0
      %731 = vmatprep.subr.bf16.mxu0 0
      %732 = vmatpush1.bf16.msra.mxu0 0
      %733 = vmatprep.subr.bf16.mxu0 0
      %734 = vmatpush1.bf16.msra.mxu0 0
      %735 = vmatprep.subr.bf16.mxu0 0
      %736 = vmatpush1.bf16.msra.mxu0 0
      %737 = vmatprep.subr.bf16.mxu0 0
      %738 = vmatpush1.bf16.msra.mxu0 0
      %739 = vmatprep.subr.bf16.mxu0 0
      %740 = vmatpush1.bf16.msra.mxu0 0
      %741 = vmatprep.subr.bf16.mxu0 0
      %742 = vmatpush1.bf16.msra.mxu0 0
      %743 = vmatprep.mubr.bf16.mxu0 0
      %744 = vmatmul.mubr.bf16.gmra.mrb[0].mxu0 %v420
      %v745 = vpop.f32.mrb[0].mxu0
      %v746 = vadd.f32 0.0, %v745
      %v747 = vpop.f32.mrb[0].mxu0
      %v748 = vadd.f32 0.0, %v747
      %v749 = vpop.f32.mrb[0].mxu0
      %v750 = vpop.f32.mrb[0].mxu0
      %751 = vdwg.mxu0
      %s752 = scalar_lea.vmem %s3, 8
      %v753 = vld [vmem:[%s752] sm:$0xf]
      %v754 = vpack.c.bf16 %v746, %v746
      %v755 = vpack.c.bf16 %v748, %v748
      %v757 = vsel %vm560, %v753, 0
      %v760 = vsel %vm564, %v754, 0
      %v763 = vsel %vm564, %v755, 0
      %765 = vmatprep.subr.bf16.mxu0 %v763
      %766 = vmatpush1.bf16.msra.mxu0 %v760
      %767 = vmatprep.subr.bf16.mxu0 0
      %768 = vmatpush1.bf16.msra.mxu0 0
      %769 = vmatprep.subr.bf16.mxu0 0
      %770 = vmatpush1.bf16.msra.mxu0 0
      %771 = vmatprep.subr.bf16.mxu0 0
      %772 = vmatpush1.bf16.msra.mxu0 0
      %773 = vmatprep.subr.bf16.mxu0 0
      %774 = vmatpush1.bf16.msra.mxu0 0
      %775 = vmatprep.subr.bf16.mxu0 0
      %776 = vmatpush1.bf16.msra.mxu0 0
      %777 = vmatprep.subr.bf16.mxu0 0
      %778 = vmatpush1.bf16.msra.mxu0 0
      %779 = vmatprep.subr.bf16.mxu0 0
      %780 = vmatpush1.bf16.msra.mxu0 0
      %781 = vmatprep.subr.bf16.mxu0 0
      %782 = vmatpush1.bf16.msra.mxu0 0
      %783 = vmatprep.subr.bf16.mxu0 0
      %784 = vmatpush1.bf16.msra.mxu0 0
      %785 = vmatprep.subr.bf16.mxu0 0
      %786 = vmatpush1.bf16.msra.mxu0 0
      %787 = vmatprep.subr.bf16.mxu0 0
      %788 = vmatpush1.bf16.msra.mxu0 0
      %789 = vmatprep.subr.bf16.mxu0 0
      %790 = vmatpush1.bf16.msra.mxu0 0
      %791 = vmatprep.subr.bf16.mxu0 0
      %792 = vmatpush1.bf16.msra.mxu0 0
      %793 = vmatprep.subr.bf16.mxu0 0
      %794 = vmatpush1.bf16.msra.mxu0 0
      %795 = vmatprep.subr.bf16.mxu0 0
      %796 = vmatpush1.bf16.msra.mxu0 0
      %797 = vmatprep.mubr.bf16.mxu0 0
      %798 = vmatmul.mubr.bf16.gmra.mrb[0].mxu0 %v757
      %v799 = vpop.f32.mrb[0].mxu0
      %v800 = vadd.f32 0.0, %v799
      %v801 = vpop.f32.mrb[0].mxu0
      %v802 = vadd.f32 0.0, %v801
      %v803 = vpop.f32.mrb[0].mxu0
      %v804 = vpop.f32.mrb[0].mxu0
      %805 = vdwg.mxu0
      %v806 = vadd.f32 %v656, %v800
      %v807 = vadd.f32 %v658, %v802
      %s808 = scalar_lea.vmem %s5, 192
      %v809 = vld [vmem:[%s808] sm:$0xff]
      %v810 = vld [vmem:[%s808 + $0x8] sm:$0xff]
      %v811 = vld [vmem:[%s808 + $0x10] sm:$0xff]
      %v812 = vld [vmem:[%s808 + $0x18] sm:$0xff]
      %v813 = vld [vmem:[%s808 + $0x20] sm:$0xff]
      %v814 = vld [vmem:[%s808 + $0x28] sm:$0xff]
      %v815 = vld [vmem:[%s808 + $0x30] sm:$0xff]
      %v816 = vld [vmem:[%s808 + $0x38] sm:$0xff]
      %v825 = vunpack.c.l.b16 %v809
      %v826 = vunpack.c.h.b16 %v809
      %v827 = vunpack.c.l.b16 %v810
      %v828 = vunpack.c.h.b16 %v810
      %v829 = vunpack.c.l.b16 %v811
      %v830 = vunpack.c.h.b16 %v811
      %v831 = vunpack.c.l.b16 %v812
      %v832 = vunpack.c.h.b16 %v812
      %v833 = vunpack.c.l.b16 %v813
      %v834 = vunpack.c.h.b16 %v813
      %v835 = vunpack.c.l.b16 %v814
      %v836 = vunpack.c.h.b16 %v814
      %v837 = vunpack.c.l.b16 %v815
      %v838 = vunpack.c.h.b16 %v815
      %v839 = vunpack.c.l.b16 %v816
      %v840 = vunpack.c.h.b16 %v816
      %v841 = vpack.c.b16 %v827, %v825
      %v842 = vpack.c.b16 %v828, %v826
      %v843 = vpack.c.b16 %v831, %v829
      %v844 = vpack.c.b16 %v832, %v830
      %v845 = vpack.c.b16 %v835, %v833
      %v846 = vpack.c.b16 %v836, %v834
      %v847 = vpack.c.b16 %v839, %v837
      %v848 = vpack.c.b16 %v840, %v838
      %857 = vmatprep.subr.bf16.mxu0 %v842
      %858 = vmatpush1.bf16.msra.mxu0 %v841
      %859 = vmatprep.subr.bf16.mxu0 %v844
      %860 = vmatpush1.bf16.msra.mxu0 %v843
      %861 = vmatprep.subr.bf16.mxu0 %v846
      %862 = vmatpush1.bf16.msra.mxu0 %v845
      %863 = vmatprep.subr.bf16.mxu0 %v848
      %864 = vmatpush1.bf16.msra.mxu0 %v847
      %865 = vmatprep.subr.bf16.mxu0 0
      %866 = vmatpush1.bf16.msra.mxu0 0
      %867 = vmatprep.subr.bf16.mxu0 0
      %868 = vmatpush1.bf16.msra.mxu0 0
      %869 = vmatprep.subr.bf16.mxu0 0
      %870 = vmatpush1.bf16.msra.mxu0 0
      %871 = vmatprep.subr.bf16.mxu0 0
      %872 = vmatpush1.bf16.msra.mxu0 0
      %873 = vmatprep.subr.bf16.mxu0 0
      %874 = vmatpush1.bf16.msra.mxu0 0
      %875 = vmatprep.subr.bf16.mxu0 0
      %876 = vmatpush1.bf16.msra.mxu0 0
      %877 = vmatprep.subr.bf16.mxu0 0
      %878 = vmatpush1.bf16.msra.mxu0 0
      %879 = vmatprep.subr.bf16.mxu0 0
      %880 = vmatpush1.bf16.msra.mxu0 0
      %881 = vmatprep.subr.bf16.mxu0 0
      %882 = vmatpush1.bf16.msra.mxu0 0
      %883 = vmatprep.subr.bf16.mxu0 0
      %884 = vmatpush1.bf16.msra.mxu0 0
      %885 = vmatprep.subr.bf16.mxu0 0
      %886 = vmatpush1.bf16.msra.mxu0 0
      %887 = vmatprep.subr.bf16.mxu0 0
      %888 = vmatpush1.bf16.msra.mxu0 0
      %889 = vmatprep.mubr.bf16.mxu0 0
      %890 = vmatmul.mubr.bf16.gmra.mrb[0].mxu0 %v420
      %v891 = vpop.f32.mrb[0].mxu0
      %v892 = vadd.f32 0.0, %v891
      %v893 = vpop.f32.mrb[0].mxu0
      %v894 = vadd.f32 0.0, %v893
      %v895 = vpop.f32.mrb[0].mxu0
      %v896 = vpop.f32.mrb[0].mxu0
      %897 = vdwg.mxu0
      %s898 = scalar_lea.vmem %s3, 12
      %v899 = vld [vmem:[%s898] sm:$0xf]
      %v900 = vpack.c.bf16 %v892, %v892
      %v901 = vpack.c.bf16 %v894, %v894
      %v903 = vsel %vm560, %v899, 0
      %v906 = vsel %vm564, %v900, 0
      %v909 = vsel %vm564, %v901, 0
      %911 = vmatprep.subr.bf16.mxu0 %v909
      %912 = vmatpush1.bf16.msra.mxu0 %v906
      %913 = vmatprep.subr.bf16.mxu0 0
      %914 = vmatpush1.bf16.msra.mxu0 0
      %915 = vmatprep.subr.bf16.mxu0 0
      %916 = vmatpush1.bf16.msra.mxu0 0
      %917 = vmatprep.subr.bf16.mxu0 0
      %918 = vmatpush1.bf16.msra.mxu0 0
      %919 = vmatprep.subr.bf16.mxu0 0
      %920 = vmatpush1.bf16.msra.mxu0 0
      %921 = vmatprep.subr.bf16.mxu0 0
      %922 = vmatpush1.bf16.msra.mxu0 0
      %923 = vmatprep.subr.bf16.mxu0 0
      %924 = vmatpush1.bf16.msra.mxu0 0
      %925 = vmatprep.subr.bf16.mxu0 0
      %926 = vmatpush1.bf16.msra.mxu0 0
      %927 = vmatprep.subr.bf16.mxu0 0
      %928 = vmatpush1.bf16.msra.mxu0 0
      %929 = vmatprep.subr.bf16.mxu0 0
      %930 = vmatpush1.bf16.msra.mxu0 0
      %931 = vmatprep.subr.bf16.mxu0 0
      %932 = vmatpush1.bf16.msra.mxu0 0
      %933 = vmatprep.subr.bf16.mxu0 0
      %934 = vmatpush1.bf16.msra.mxu0 0
      %935 = vmatprep.subr.bf16.mxu0 0
      %936 = vmatpush1.bf16.msra.mxu0 0
      %937 = vmatprep.subr.bf16.mxu0 0
      %938 = vmatpush1.bf16.msra.mxu0 0
      %939 = vmatprep.subr.bf16.mxu0 0
      %940 = vmatpush1.bf16.msra.mxu0 0
      %941 = vmatprep.subr.bf16.mxu0 0
      %942 = vmatpush1.bf16.msra.mxu0 0
      %943 = vmatprep.mubr.bf16.mxu0 0
      %944 = vmatmul.mubr.bf16.gmra.mrb[0].mxu0 %v903
      %v945 = vpop.f32.mrb[0].mxu0
      %v946 = vadd.f32 0.0, %v945
      %v947 = vpop.f32.mrb[0].mxu0
      %v948 = vadd.f32 0.0, %v947
      %v949 = vpop.f32.mrb[0].mxu0
      %v950 = vpop.f32.mrb[0].mxu0
      %951 = vdwg.mxu0
      %v952 = vadd.f32 %v806, %v946
      %v953 = vadd.f32 %v807, %v948
      %v954 = vld [vmem:[%s8] sm:$0xff]
      %956 = vset.pattern.permute.xlu0 0
      %957 = vperm.xlu0 %956, %v954
      %v958 = vpop.permute.xlu0 %957
      %v960 = vadd.f32 %v952, %v958
      %v961 = vadd.f32 %v953, %v958
      %v962 = vld [vmem:[%s357] sm:$0xff]
      %v963 = vld [vmem:[%s357 + $0x8] sm:$0xff]
      %v964 = vld [vmem:[%s357 + $0x10] sm:$0xff]
      %v965 = vld [vmem:[%s357 + $0x18] sm:$0xff]
      %v966 = vpack.c.bf16 %v962, %v962
      %v967 = vpack.c.bf16 %v963, %v963
      %v968 = vpack.c.bf16 %v964, %v964
      %v969 = vpack.c.bf16 %v965, %v965
      %v970 = vld [vmem:[%s6] sm:$0xff]
      %v971 = vld [vmem:[%s6 + $0x8] sm:$0xff]
      %v972 = vld [vmem:[%s6 + $0x10] sm:$0xff]
      %v973 = vld [vmem:[%s6 + $0x18] sm:$0xff]
      %v974 = vld [vmem:[%s6 + $0x20] sm:$0xff]
      %v975 = vld [vmem:[%s6 + $0x28] sm:$0xff]
      %v976 = vld [vmem:[%s6 + $0x30] sm:$0xff]
      %v977 = vld [vmem:[%s6 + $0x38] sm:$0xff]
      %v978 = vld [vmem:[%s6 + $0x40] sm:$0xff]
      %v979 = vld [vmem:[%s6 + $0x48] sm:$0xff]
      %v980 = vld [vmem:[%s6 + $0x50] sm:$0xff]
      %v981 = vld [vmem:[%s6 + $0x58] sm:$0xff]
      %v982 = vld [vmem:[%s6 + $0x60] sm:$0xff]
      %v983 = vld [vmem:[%s6 + $0x68] sm:$0xff]
      %v984 = vld [vmem:[%s6 + $0x70] sm:$0xff]
      %v985 = vld [vmem:[%s6 + $0x78] sm:$0xff]
      %v986 = vld [vmem:[%s6 + $0x80] sm:$0xff]
      %v987 = vld [vmem:[%s6 + $0x88] sm:$0xff]
      %v988 = vld [vmem:[%s6 + $0x90] sm:$0xff]
      %v989 = vld [vmem:[%s6 + $0x98] sm:$0xff]
      %v990 = vld [vmem:[%s6 + $0xa0] sm:$0xff]
      %v991 = vld [vmem:[%s6 + $0xa8] sm:$0xff]
      %v992 = vld [vmem:[%s6 + $0xb0] sm:$0xff]
      %v993 = vld [vmem:[%s6 + $0xb8] sm:$0xff]
      %v994 = vld [vmem:[%s6 + $0xc0] sm:$0xff]
      %v995 = vld [vmem:[%s6 + $0xc8] sm:$0xff]
      %v996 = vld [vmem:[%s6 + $0xd0] sm:$0xff]
      %v997 = vld [vmem:[%s6 + $0xd8] sm:$0xff]
      %v998 = vld [vmem:[%s6 + $0xe0] sm:$0xff]
      %v999 = vld [vmem:[%s6 + $0xe8] sm:$0xff]
      %v1000 = vld [vmem:[%s6 + $0xf0] sm:$0xff]
      %v1001 = vld [vmem:[%s6 + $0xf8] sm:$0xff]
      %v1002 = vld [vmem:[%s6 + $0x100] sm:$0xff]
      %v1003 = vld [vmem:[%s6 + $0x108] sm:$0xff]
      %v1004 = vld [vmem:[%s6 + $0x110] sm:$0xff]
      %v1005 = vld [vmem:[%s6 + $0x118] sm:$0xff]
      %v1006 = vld [vmem:[%s6 + $0x120] sm:$0xff]
      %v1007 = vld [vmem:[%s6 + $0x128] sm:$0xff]
      %v1008 = vld [vmem:[%s6 + $0x130] sm:$0xff]
      %v1009 = vld [vmem:[%s6 + $0x138] sm:$0xff]
      %v1010 = vld [vmem:[%s6 + $0x140] sm:$0xff]
      %v1011 = vld [vmem:[%s6 + $0x148] sm:$0xff]
      %v1012 = vld [vmem:[%s6 + $0x150] sm:$0xff]
      %v1013 = vld [vmem:[%s6 + $0x158] sm:$0xff]
      %v1014 = vld [vmem:[%s6 + $0x160] sm:$0xff]
      %v1015 = vld [vmem:[%s6 + $0x168] sm:$0xff]
      %v1016 = vld [vmem:[%s6 + $0x170] sm:$0xff]
      %v1017 = vld [vmem:[%s6 + $0x178] sm:$0xff]
      %v1018 = vld [vmem:[%s6 + $0x180] sm:$0xff]
      %v1019 = vld [vmem:[%s6 + $0x188] sm:$0xff]
      %v1070 = vunpack.c.l.b16 %v970
      %v1071 = vunpack.c.h.b16 %v970
      %v1072 = vunpack.c.l.b16 %v971
      %v1073 = vunpack.c.h.b16 %v971
      %v1074 = vunpack.c.l.b16 %v972
      %v1075 = vunpack.c.h.b16 %v972
      %v1076 = vunpack.c.l.b16 %v973
      %v1077 = vunpack.c.h.b16 %v973
      %v1078 = vunpack.c.l.b16 %v974
      %v1079 = vunpack.c.h.b16 %v974
      %v1080 = vunpack.c.l.b16 %v975
      %v1081 = vunpack.c.h.b16 %v975
      %v1082 = vunpack.c.l.b16 %v976
      %v1083 = vunpack.c.h.b16 %v976
      %v1084 = vunpack.c.l.b16 %v977
      %v1085 = vunpack.c.h.b16 %v977
      %v1086 = vunpack.c.l.b16 %v978
      %v1087 = vunpack.c.h.b16 %v978
      %v1088 = vunpack.c.l.b16 %v979
      %v1089 = vunpack.c.h.b16 %v979
      %v1090 = vunpack.c.l.b16 %v980
      %v1091 = vunpack.c.h.b16 %v980
      %v1092 = vunpack.c.l.b16 %v981
      %v1093 = vunpack.c.h.b16 %v981
      %v1094 = vunpack.c.l.b16 %v982
      %v1095 = vunpack.c.h.b16 %v982
      %v1096 = vunpack.c.l.b16 %v983
      %v1097 = vunpack.c.h.b16 %v983
      %v1098 = vunpack.c.l.b16 %v984
      %v1099 = vunpack.c.h.b16 %v984
      %v1100 = vunpack.c.l.b16 %v985
      %v1101 = vunpack.c.h.b16 %v985
      %v1102 = vunpack.c.l.b16 %v986
      %v1103 = vunpack.c.h.b16 %v986
      %v1104 = vunpack.c.l.b16 %v987
      %v1105 = vunpack.c.h.b16 %v987
      %v1106 = vunpack.c.l.b16 %v988
      %v1107 = vunpack.c.h.b16 %v988
      %v1108 = vunpack.c.l.b16 %v989
      %v1109 = vunpack.c.h.b16 %v989
      %v1110 = vunpack.c.l.b16 %v990
      %v1111 = vunpack.c.h.b16 %v990
      %v1112 = vunpack.c.l.b16 %v991
      %v1113 = vunpack.c.h.b16 %v991
      %v1114 = vunpack.c.l.b16 %v992
      %v1115 = vunpack.c.h.b16 %v992
      %v1116 = vunpack.c.l.b16 %v993
      %v1117 = vunpack.c.h.b16 %v993
      %v1118 = vunpack.c.l.b16 %v994
      %v1119 = vunpack.c.h.b16 %v994
      %v1120 = vunpack.c.l.b16 %v995
      %v1121 = vunpack.c.h.b16 %v995
      %v1122 = vunpack.c.l.b16 %v996
      %v1123 = vunpack.c.h.b16 %v996
      %v1124 = vunpack.c.l.b16 %v997
      %v1125 = vunpack.c.h.b16 %v997
      %v1126 = vunpack.c.l.b16 %v998
      %v1127 = vunpack.c.h.b16 %v998
      %v1128 = vunpack.c.l.b16 %v999
      %v1129 = vunpack.c.h.b16 %v999
      %v1130 = vunpack.c.l.b16 %v1000
      %v1131 = vunpack.c.h.b16 %v1000
      %v1132 = vunpack.c.l.b16 %v1001
      %v1133 = vunpack.c.h.b16 %v1001
      %v1134 = vunpack.c.l.b16 %v1002
      %v1135 = vunpack.c.h.b16 %v1002
      %v1136 = vunpack.c.l.b16 %v1003
      %v1137 = vunpack.c.h.b16 %v1003
      %v1138 = vunpack.c.l.b16 %v1004
      %v1139 = vunpack.c.h.b16 %v1004
      %v1140 = vunpack.c.l.b16 %v1005
      %v1141 = vunpack.c.h.b16 %v1005
      %v1142 = vunpack.c.l.b16 %v1006
      %v1143 = vunpack.c.h.b16 %v1006
      %v1144 = vunpack.c.l.b16 %v1007
      %v1145 = vunpack.c.h.b16 %v1007
      %v1146 = vunpack.c.l.b16 %v1008
      %v1147 = vunpack.c.h.b16 %v1008
      %v1148 = vunpack.c.l.b16 %v1009
      %v1149 = vunpack.c.h.b16 %v1009
      %v1150 = vunpack.c.l.b16 %v1010
      %v1151 = vunpack.c.h.b16 %v1010
      %v1152 = vunpack.c.l.b16 %v1011
      %v1153 = vunpack.c.h.b16 %v1011
      %v1154 = vunpack.c.l.b16 %v1012
      %v1155 = vunpack.c.h.b16 %v1012
      %v1156 = vunpack.c.l.b16 %v1013
      %v1157 = vunpack.c.h.b16 %v1013
      %v1158 = vunpack.c.l.b16 %v1014
      %v1159 = vunpack.c.h.b16 %v1014
      %v1160 = vunpack.c.l.b16 %v1015
      %v1161 = vunpack.c.h.b16 %v1015
      %v1162 = vunpack.c.l.b16 %v1016
      %v1163 = vunpack.c.h.b16 %v1016
      %v1164 = vunpack.c.l.b16 %v1017
      %v1165 = vunpack.c.h.b16 %v1017
      %v1166 = vunpack.c.l.b16 %v1018
      %v1167 = vunpack.c.h.b16 %v1018
      %v1168 = vunpack.c.l.b16 %v1019
      %v1169 = vunpack.c.h.b16 %v1019
      %v1170 = vpack.c.b16 %v1072, %v1070
      %v1171 = vpack.c.b16 %v1073, %v1071
      %v1172 = vpack.c.b16 %v1076, %v1074
      %v1173 = vpack.c.b16 %v1077, %v1075
      %v1174 = vpack.c.b16 %v1080, %v1078
      %v1175 = vpack.c.b16 %v1081, %v1079
      %v1176 = vpack.c.b16 %v1084, %v1082
      %v1177 = vpack.c.b16 %v1085, %v1083
      %v1178 = vpack.c.b16 %v1088, %v1086
      %v1179 = vpack.c.b16 %v1089, %v1087
      %v1180 = vpack.c.b16 %v1092, %v1090
      %v1181 = vpack.c.b16 %v1093, %v1091
      %v1182 = vpack.c.b16 %v1096, %v1094
      %v1183 = vpack.c.b16 %v1097, %v1095
      %v1184 = vpack.c.b16 %v1100, %v1098
      %v1185 = vpack.c.b16 %v1101, %v1099
      %v1186 = vpack.c.b16 %v1104, %v1102
      %v1187 = vpack.c.b16 %v1105, %v1103
      %v1188 = vpack.c.b16 %v1108, %v1106
      %v1189 = vpack.c.b16 %v1109, %v1107
      %v1190 = vpack.c.b16 %v1112, %v1110
      %v1191 = vpack.c.b16 %v1113, %v1111
      %v1192 = vpack.c.b16 %v1116, %v1114
      %v1193 = vpack.c.b16 %v1117, %v1115
      %v1194 = vpack.c.b16 %v1120, %v1118
      %v1195 = vpack.c.b16 %v1121, %v1119
      %v1196 = vpack.c.b16 %v1124, %v1122
      %v1197 = vpack.c.b16 %v1125, %v1123
      %v1198 = vpack.c.b16 %v1128, %v1126
      %v1199 = vpack.c.b16 %v1129, %v1127
      %v1200 = vpack.c.b16 %v1132, %v1130
      %v1201 = vpack.c.b16 %v1133, %v1131
      %v1202 = vpack.c.b16 %v1136, %v1134
      %v1203 = vpack.c.b16 %v1137, %v1135
      %v1204 = vpack.c.b16 %v1140, %v1138
      %v1205 = vpack.c.b16 %v1141, %v1139
      %v1206 = vpack.c.b16 %v1144, %v1142
      %v1207 = vpack.c.b16 %v1145, %v1143
      %v1208 = vpack.c.b16 %v1148, %v1146
      %v1209 = vpack.c.b16 %v1149, %v1147
      %v1210 = vpack.c.b16 %v1152, %v1150
      %v1211 = vpack.c.b16 %v1153, %v1151
      %v1212 = vpack.c.b16 %v1156, %v1154
      %v1213 = vpack.c.b16 %v1157, %v1155
      %v1214 = vpack.c.b16 %v1160, %v1158
      %v1215 = vpack.c.b16 %v1161, %v1159
      %v1216 = vpack.c.b16 %v1164, %v1162
      %v1217 = vpack.c.b16 %v1165, %v1163
      %v1218 = vpack.c.b16 %v1168, %v1166
      %v1219 = vpack.c.b16 %v1169, %v1167
      %vm1270 = vcmask 130048
      %v1272 = vsel %vm1270, %v969, 0
      %1274 = vmatprep.subr.bf16.mxu0 %v1171
      %1275 = vmatpush1.bf16.msra.mxu0 %v1170
      %1276 = vmatprep.subr.bf16.mxu0 %v1173
      %1277 = vmatpush1.bf16.msra.mxu0 %v1172
      %1278 = vmatprep.subr.bf16.mxu0 %v1175
      %1279 = vmatpush1.bf16.msra.mxu0 %v1174
      %1280 = vmatprep.subr.bf16.mxu0 %v1177
      %1281 = vmatpush1.bf16.msra.mxu0 %v1176
      %1282 = vmatprep.subr.bf16.mxu0 %v1179
      %1283 = vmatpush1.bf16.msra.mxu0 %v1178
      %1284 = vmatprep.subr.bf16.mxu0 %v1181
      %1285 = vmatpush1.bf16.msra.mxu0 %v1180
      %1286 = vmatprep.subr.bf16.mxu0 %v1183
      %1287 = vmatpush1.bf16.msra.mxu0 %v1182
      %1288 = vmatprep.subr.bf16.mxu0 %v1185
      %1289 = vmatpush1.bf16.msra.mxu0 %v1184
      %1290 = vmatprep.subr.bf16.mxu0 %v1187
      %1291 = vmatpush1.bf16.msra.mxu0 %v1186
      %1292 = vmatprep.subr.bf16.mxu0 %v1189
      %1293 = vmatpush1.bf16.msra.mxu0 %v1188
      %1294 = vmatprep.subr.bf16.mxu0 %v1191
      %1295 = vmatpush1.bf16.msra.mxu0 %v1190
      %1296 = vmatprep.subr.bf16.mxu0 %v1193
      %1297 = vmatpush1.bf16.msra.mxu0 %v1192
      %1298 = vmatprep.subr.bf16.mxu0 %v1195
      %1299 = vmatpush1.bf16.msra.mxu0 %v1194
      %1300 = vmatprep.subr.bf16.mxu0 %v1197
      %1301 = vmatpush1.bf16.msra.mxu0 %v1196
      %1302 = vmatprep.subr.bf16.mxu0 %v1199
      %1303 = vmatpush1.bf16.msra.mxu0 %v1198
      %1304 = vmatprep.subr.bf16.mxu0 %v1201
      %1305 = vmatpush1.bf16.msra.mxu0 %v1200
      %1306 = vmatprep.mubr.bf16.mxu0 %v967
      %1307 = vmatmul.mubr.bf16.gmra.mrb[0].mxu0 %v966
      %v1308 = vpop.f32.mrb[0].mxu0
      %v1309 = vadd.f32 0.0, %v1308
      %v1310 = vpop.f32.mrb[0].mxu0
      %v1311 = vadd.f32 0.0, %v1310
      %v1312 = vpop.f32.mrb[0].mxu0
      %v1313 = vpop.f32.mrb[0].mxu0
      %1314 = vdwg.mxu0
      %1315 = vmatprep.subr.bf16.mxu0 %v1203
      %1316 = vmatpush1.bf16.msra.mxu0 %v1202
      %1317 = vmatprep.subr.bf16.mxu0 %v1205
      %1318 = vmatpush1.bf16.msra.mxu0 %v1204
      %1319 = vmatprep.subr.bf16.mxu0 %v1207
      %1320 = vmatpush1.bf16.msra.mxu0 %v1206
      %1321 = vmatprep.subr.bf16.mxu0 %v1209
      %1322 = vmatpush1.bf16.msra.mxu0 %v1208
      %1323 = vmatprep.subr.bf16.mxu0 %v1211
      %1324 = vmatpush1.bf16.msra.mxu0 %v1210
      %1325 = vmatprep.subr.bf16.mxu0 %v1213
      %1326 = vmatpush1.bf16.msra.mxu0 %v1212
      %1327 = vmatprep.subr.bf16.mxu0 %v1215
      %1328 = vmatpush1.bf16.msra.mxu0 %v1214
      %1329 = vmatprep.subr.bf16.mxu0 %v1217
      %1330 = vmatpush1.bf16.msra.mxu0 %v1216
      %1331 = vmatprep.subr.bf16.mxu0 %v1219
      %1332 = vmatpush1.bf16.msra.mxu0 %v1218
      %1333 = vmatprep.subr.bf16.mxu0 0
      %1334 = vmatpush1.bf16.msra.mxu0 0
      %1335 = vmatprep.subr.bf16.mxu0 0
      %1336 = vmatpush1.bf16.msra.mxu0 0
      %1337 = vmatprep.subr.bf16.mxu0 0
      %1338 = vmatpush1.bf16.msra.mxu0 0
      %1339 = vmatprep.subr.bf16.mxu0 0
      %1340 = vmatpush1.bf16.msra.mxu0 0
      %1341 = vmatprep.subr.bf16.mxu0 0
      %1342 = vmatpush1.bf16.msra.mxu0 0
      %1343 = vmatprep.subr.bf16.mxu0 0
      %1344 = vmatpush1.bf16.msra.mxu0 0
      %1345 = vmatprep.subr.bf16.mxu0 0
      %1346 = vmatpush1.bf16.msra.mxu0 0
      %1347 = vmatprep.mubr.bf16.mxu0 %v1272
      %1348 = vmatmul.mubr.bf16.gmra.mrb[0].mxu0 %v968
      %v1349 = vpop.f32.mrb[0].mxu0
      %v1350 = vadd.f32 %v1309, %v1349
      %v1351 = vpop.f32.mrb[0].mxu0
      %v1352 = vadd.f32 %v1311, %v1351
      %v1353 = vpop.f32.mrb[0].mxu0
      %v1354 = vpop.f32.mrb[0].mxu0
      %1355 = vdwg.mxu0
      %v1356 = vld [vmem:[%s361] sm:$0xf]
      %1358 = vset.pattern.permute.xlu0 0
      %1359 = vperm.xlu0 %1358, %v1356
      %v1360 = vpop.permute.xlu0 %1359
      %v1362 = vpack.c.bf16 %v1350, %v960
      %v1363 = vpack.c.bf16 %v1352, %v961
      %v1364 = vpack.c.bf16 %v1360, %v1360
      %v1365 = vld [vmem:[%s4] sm:$0xf]
      %vm1366 = vcmask 162816
      %v1368 = vsel %vm1366, %v1365, 0
      %vm1370 = vcmask 1041408
      %v1372 = vsel %vm1370, %v1364, 0
      %1374 = vmatprep.subr.bf16.mxu0 %v1363
      %1375 = vmatpush1.bf16.msra.mxu0 %v1362
      %1376 = vmatprep.subr.bf16.mxu0 %v1372
      %1377 = vmatpush1.bf16.msra.mxu0 %v1372
      %1378 = vmatprep.subr.bf16.mxu0 0
      %1379 = vmatpush1.bf16.msra.mxu0 0
      %1380 = vmatprep.subr.bf16.mxu0 0
      %1381 = vmatpush1.bf16.msra.mxu0 0
      %1382 = vmatprep.subr.bf16.mxu0 0
      %1383 = vmatpush1.bf16.msra.mxu0 0
      %1384 = vmatprep.subr.bf16.mxu0 0
      %1385 = vmatpush1.bf16.msra.mxu0 0
      %1386 = vmatprep.subr.bf16.mxu0 0
      %1387 = vmatpush1.bf16.msra.mxu0 0
      %1388 = vmatprep.subr.bf16.mxu0 0
      %1389 = vmatpush1.bf16.msra.mxu0 0
      %1390 = vmatprep.subr.bf16.mxu0 0
      %1391 = vmatpush1.bf16.msra.mxu0 0
      %1392 = vmatprep.subr.bf16.mxu0 0
      %1393 = vmatpush1.bf16.msra.mxu0 0
      %1394 = vmatprep.subr.bf16.mxu0 0
      %1395 = vmatpush1.bf16.msra.mxu0 0
      %1396 = vmatprep.subr.bf16.mxu0 0
      %1397 = vmatpush1.bf16.msra.mxu0 0
      %1398 = vmatprep.subr.bf16.mxu0 0
      %1399 = vmatpush1.bf16.msra.mxu0 0
      %1400 = vmatprep.subr.bf16.mxu0 0
      %1401 = vmatpush1.bf16.msra.mxu0 0
      %1402 = vmatprep.subr.bf16.mxu0 0
      %1403 = vmatpush1.bf16.msra.mxu0 0
      %1404 = vmatprep.subr.bf16.mxu0 0
      %1405 = vmatpush1.bf16.msra.mxu0 0
      %1406 = vmatprep.mubr.bf16.mxu0 0
      %1407 = vmatmul.mubr.bf16.gmra.mrb[0].mxu0 %v1368
      %v1408 = vpop.f32.mrb[0].mxu0
      %v1409 = vadd.f32 0.0, %v1408
      %v1410 = vpop.f32.mrb[0].mxu0
      %v1411 = vadd.f32 0.0, %v1410
      %v1412 = vpop.f32.mrb[0].mxu0
      %v1413 = vpop.f32.mrb[0].mxu0
      %1414 = vdwg.mxu0
      %1416 = vrot.lane.b32.xlu0 %v1411, 17
      %v1417 = vpop.permute.xlu0 %1416
      %1420 = vrot.lane.b32.xlu0 %v1409, 17
      %v1421 = vpop.permute.xlu0 %1420
      %vm1422 = vcmask 138240
      %v1423 = vsel %vm1422, %v1421, %v1417
      %v1426 = vsel %vm1422, %v1417, %v1421
      %v1427 = vld [vmem:[%s7] ss:$8 sm:$0x3]
      %v1429 = vlaneseq
      %v1430 = vshrl.u32 %v1429, 7
      %v1431 = vsub.s32 0, %v1430
      %v1432 = vrot.slane %v1427, %v1431
      %v1433 = vlaneseq
      %v1434 = vshrl.u32 %v1433, 7
      %v1435 = vsub.s32 1, %v1434
      %v1436 = vrot.slane %v1427, %v1435
      %v1439 = vmul.f32 %v1426, %v1432
      %v1440 = vmul.f32 %v1423, %v1436
      %v1441 = vadd.f32 %v1439, 0.0
      %v1442 = vadd.f32 %v1440, 0.0
      %s1443 = scalar_lea.vmem %s4, 4
      %v1444 = vld [vmem:[%s1443] sm:$0xf]
      %v1446 = vsel %vm1366, %v1444, 0
      %1448 = vmatprep.subr.bf16.mxu0 %v1363
      %1449 = vmatpush1.bf16.msra.mxu0 %v1362
      %1450 = vmatprep.subr.bf16.mxu0 %v1372
      %1451 = vmatpush1.bf16.msra.mxu0 %v1372
      %1452 = vmatprep.subr.bf16.mxu0 0
      %1453 = vmatpush1.bf16.msra.mxu0 0
      %1454 = vmatprep.subr.bf16.mxu0 0
      %1455 = vmatpush1.bf16.msra.mxu0 0
      %1456 = vmatprep.subr.bf16.mxu0 0
      %1457 = vmatpush1.bf16.msra.mxu0 0
      %1458 = vmatprep.subr.bf16.mxu0 0
      %1459 = vmatpush1.bf16.msra.mxu0 0
      %1460 = vmatprep.subr.bf16.mxu0 0
      %1461 = vmatpush1.bf16.msra.mxu0 0
      %1462 = vmatprep.subr.bf16.mxu0 0
      %1463 = vmatpush1.bf16.msra.mxu0 0
      %1464 = vmatprep.subr.bf16.mxu0 0
      %1465 = vmatpush1.bf16.msra.mxu0 0
      %1466 = vmatprep.subr.bf16.mxu0 0
      %1467 = vmatpush1.bf16.msra.mxu0 0
      %1468 = vmatprep.subr.bf16.mxu0 0
      %1469 = vmatpush1.bf16.msra.mxu0 0
      %1470 = vmatprep.subr.bf16.mxu0 0
      %1471 = vmatpush1.bf16.msra.mxu0 0
      %1472 = vmatprep.subr.bf16.mxu0 0
      %1473 = vmatpush1.bf16.msra.mxu0 0
      %1474 = vmatprep.subr.bf16.mxu0 0
      %1475 = vmatpush1.bf16.msra.mxu0 0
      %1476 = vmatprep.subr.bf16.mxu0 0
      %1477 = vmatpush1.bf16.msra.mxu0 0
      %1478 = vmatprep.subr.bf16.mxu0 0
      %1479 = vmatpush1.bf16.msra.mxu0 0
      %1480 = vmatprep.mubr.bf16.mxu0 0
      %1481 = vmatmul.mubr.bf16.gmra.mrb[0].mxu0 %v1446
      %v1482 = vpop.f32.mrb[0].mxu0
      %v1483 = vadd.f32 0.0, %v1482
      %v1484 = vpop.f32.mrb[0].mxu0
      %v1485 = vadd.f32 0.0, %v1484
      %v1486 = vpop.f32.mrb[0].mxu0
      %v1487 = vpop.f32.mrb[0].mxu0
      %1488 = vdwg.mxu0
      %1490 = vrot.lane.b32.xlu0 %v1485, 16
      %v1491 = vpop.permute.xlu0 %1490
      %1494 = vrot.lane.b32.xlu0 %v1483, 16
      %v1495 = vpop.permute.xlu0 %1494
      %v1496 = vsel %vm1270, %v1495, %v1491
      %v1499 = vsel %vm1270, %v1491, %v1495
      %s1500 = scalar_lea.vmem %s7, 1
      %v1501 = vld [vmem:[%s1500] ss:$8 sm:$0x3]
      %v1503 = vlaneseq
      %v1504 = vshrl.u32 %v1503, 7
      %v1505 = vsub.s32 0, %v1504
      %v1506 = vrot.slane %v1501, %v1505
      %v1507 = vlaneseq
      %v1508 = vshrl.u32 %v1507, 7
      %v1509 = vsub.s32 1, %v1508
      %v1510 = vrot.slane %v1501, %v1509
      %v1513 = vmul.f32 %v1499, %v1506
      %v1514 = vmul.f32 %v1496, %v1510
      %v1515 = vadd.f32 %v1441, %v1513
      %v1516 = vadd.f32 %v1442, %v1514
      %s1517 = scalar_lea.vmem %s4, 8
      %v1518 = vld [vmem:[%s1517] sm:$0xf]
      %v1520 = vsel %vm1366, %v1518, 0
      %1522 = vmatprep.subr.bf16.mxu0 %v1363
      %1523 = vmatpush1.bf16.msra.mxu0 %v1362
      %1524 = vmatprep.subr.bf16.mxu0 %v1372
      %1525 = vmatpush1.bf16.msra.mxu0 %v1372
      %1526 = vmatprep.subr.bf16.mxu0 0
      %1527 = vmatpush1.bf16.msra.mxu0 0
      %1528 = vmatprep.subr.bf16.mxu0 0
      %1529 = vmatpush1.bf16.msra.mxu0 0
      %1530 = vmatprep.subr.bf16.mxu0 0
      %1531 = vmatpush1.bf16.msra.mxu0 0
      %1532 = vmatprep.subr.bf16.mxu0 0
      %1533 = vmatpush1.bf16.msra.mxu0 0
      %1534 = vmatprep.subr.bf16.mxu0 0
      %1535 = vmatpush1.bf16.msra.mxu0 0
      %1536 = vmatprep.subr.bf16.mxu0 0
      %1537 = vmatpush1.bf16.msra.mxu0 0
      %1538 = vmatprep.subr.bf16.mxu0 0
      %1539 = vmatpush1.bf16.msra.mxu0 0
      %1540 = vmatprep.subr.bf16.mxu0 0
      %1541 = vmatpush1.bf16.msra.mxu0 0
      %1542 = vmatprep.subr.bf16.mxu0 0
      %1543 = vmatpush1.bf16.msra.mxu0 0
      %1544 = vmatprep.subr.bf16.mxu0 0
      %1545 = vmatpush1.bf16.msra.mxu0 0
      %1546 = vmatprep.subr.bf16.mxu0 0
      %1547 = vmatpush1.bf16.msra.mxu0 0
      %1548 = vmatprep.subr.bf16.mxu0 0
      %1549 = vmatpush1.bf16.msra.mxu0 0
      %1550 = vmatprep.subr.bf16.mxu0 0
      %1551 = vmatpush1.bf16.msra.mxu0 0
      %1552 = vmatprep.subr.bf16.mxu0 0
      %1553 = vmatpush1.bf16.msra.mxu0 0
      %1554 = vmatprep.mubr.bf16.mxu0 0
      %1555 = vmatmul.mubr.bf16.gmra.mrb[0].mxu0 %v1520
      %v1556 = vpop.f32.mrb[0].mxu0
      %v1557 = vadd.f32 0.0, %v1556
      %v1558 = vpop.f32.mrb[0].mxu0
      %v1559 = vadd.f32 0.0, %v1558
      %v1560 = vpop.f32.mrb[0].mxu0
      %v1561 = vpop.f32.mrb[0].mxu0
      %1562 = vdwg.mxu0
      %1564 = vrot.lane.b32.xlu0 %v1559, 15
      %v1565 = vpop.permute.xlu0 %1564
      %1568 = vrot.lane.b32.xlu0 %v1557, 15
      %v1569 = vpop.permute.xlu0 %1568
      %vm1570 = vcmask 121856
      %v1571 = vsel %vm1570, %v1569, %v1565
      %v1574 = vsel %vm1570, %v1565, %v1569
      %s1575 = scalar_lea.vmem %s7, 2
      %v1576 = vld [vmem:[%s1575] ss:$8 sm:$0x3]
      %v1578 = vlaneseq
      %v1579 = vshrl.u32 %v1578, 7
      %v1580 = vsub.s32 0, %v1579
      %v1581 = vrot.slane %v1576, %v1580
      %v1582 = vlaneseq
      %v1583 = vshrl.u32 %v1582, 7
      %v1584 = vsub.s32 1, %v1583
      %v1585 = vrot.slane %v1576, %v1584
      %v1588 = vmul.f32 %v1574, %v1581
      %v1589 = vmul.f32 %v1571, %v1585
      %v1590 = vadd.f32 %v1515, %v1588
      %v1591 = vadd.f32 %v1516, %v1589
      %s1592 = scalar_lea.vmem %s4, 12
      %v1593 = vld [vmem:[%s1592] sm:$0xf]
      %v1595 = vsel %vm1366, %v1593, 0
      %1597 = vmatprep.subr.bf16.mxu0 %v1363
      %1598 = vmatpush1.bf16.msra.mxu0 %v1362
      %1599 = vmatprep.subr.bf16.mxu0 %v1372
      %1600 = vmatpush1.bf16.msra.mxu0 %v1372
      %1601 = vmatprep.subr.bf16.mxu0 0
      %1602 = vmatpush1.bf16.msra.mxu0 0
      %1603 = vmatprep.subr.bf16.mxu0 0
      %1604 = vmatpush1.bf16.msra.mxu0 0
      %1605 = vmatprep.subr.bf16.mxu0 0
      %1606 = vmatpush1.bf16.msra.mxu0 0
      %1607 = vmatprep.subr.bf16.mxu0 0
      %1608 = vmatpush1.bf16.msra.mxu0 0
      %1609 = vmatprep.subr.bf16.mxu0 0
      %1610 = vmatpush1.bf16.msra.mxu0 0
      %1611 = vmatprep.subr.bf16.mxu0 0
      %1612 = vmatpush1.bf16.msra.mxu0 0
      %1613 = vmatprep.subr.bf16.mxu0 0
      %1614 = vmatpush1.bf16.msra.mxu0 0
      %1615 = vmatprep.subr.bf16.mxu0 0
      %1616 = vmatpush1.bf16.msra.mxu0 0
      %1617 = vmatprep.subr.bf16.mxu0 0
      %1618 = vmatpush1.bf16.msra.mxu0 0
      %1619 = vmatprep.subr.bf16.mxu0 0
      %1620 = vmatpush1.bf16.msra.mxu0 0
      %1621 = vmatprep.subr.bf16.mxu0 0
      %1622 = vmatpush1.bf16.msra.mxu0 0
      %1623 = vmatprep.subr.bf16.mxu0 0
      %1624 = vmatpush1.bf16.msra.mxu0 0
      %1625 = vmatprep.subr.bf16.mxu0 0
      %1626 = vmatpush1.bf16.msra.mxu0 0
      %1627 = vmatprep.subr.bf16.mxu0 0
      %1628 = vmatpush1.bf16.msra.mxu0 0
      %1629 = vmatprep.mubr.bf16.mxu0 0
      %1630 = vmatmul.mubr.bf16.gmra.mrb[0].mxu0 %v1595
      %v1631 = vpop.f32.mrb[0].mxu0
      %v1632 = vadd.f32 0.0, %v1631
      %v1633 = vpop.f32.mrb[0].mxu0
      %v1634 = vadd.f32 0.0, %v1633
      %v1635 = vpop.f32.mrb[0].mxu0
      %v1636 = vpop.f32.mrb[0].mxu0
      %1637 = vdwg.mxu0
      %1639 = vrot.lane.b32.xlu0 %v1634, 1
      %v1640 = vpop.permute.xlu0 %1639
      %1643 = vrot.lane.b32.xlu0 %v1632, 1
      %v1644 = vpop.permute.xlu0 %1643
      %vm1645 = vcmask 7168
      %v1646 = vsel %vm1645, %v1644, %v1640
      %v1649 = vsel %vm1645, %v1640, %v1644
      %s1650 = scalar_lea.vmem %s7, 3
      %v1651 = vld [vmem:[%s1650] ss:$8 sm:$0x3]
      %v1653 = vlaneseq
      %v1654 = vshrl.u32 %v1653, 7
      %v1655 = vsub.s32 0, %v1654
      %v1656 = vrot.slane %v1651, %v1655
      %v1657 = vlaneseq
      %v1658 = vshrl.u32 %v1657, 7
      %v1659 = vsub.s32 1, %v1658
      %v1660 = vrot.slane %v1651, %v1659
      %v1663 = vmul.f32 %v1649, %v1656
      %v1664 = vmul.f32 %v1646, %v1660
      %v1665 = vadd.f32 %v1590, %v1663
      %v1666 = vadd.f32 %v1591, %v1664
      %s1667 = scalar_lea.vmem %s4, 16
      %v1668 = vld [vmem:[%s1667] sm:$0xf]
      %v1670 = vsel %vm1366, %v1668, 0
      %1672 = vmatprep.subr.bf16.mxu0 %v1363
      %1673 = vmatpush1.bf16.msra.mxu0 %v1362
      %1674 = vmatprep.subr.bf16.mxu0 %v1372
      %1675 = vmatpush1.bf16.msra.mxu0 %v1372
      %1676 = vmatprep.subr.bf16.mxu0 0
      %1677 = vmatpush1.bf16.msra.mxu0 0
      %1678 = vmatprep.subr.bf16.mxu0 0
      %1679 = vmatpush1.bf16.msra.mxu0 0
      %1680 = vmatprep.subr.bf16.mxu0 0
      %1681 = vmatpush1.bf16.msra.mxu0 0
      %1682 = vmatprep.subr.bf16.mxu0 0
      %1683 = vmatpush1.bf16.msra.mxu0 0
      %1684 = vmatprep.subr.bf16.mxu0 0
      %1685 = vmatpush1.bf16.msra.mxu0 0
      %1686 = vmatprep.subr.bf16.mxu0 0
      %1687 = vmatpush1.bf16.msra.mxu0 0
      %1688 = vmatprep.subr.bf16.mxu0 0
      %1689 = vmatpush1.bf16.msra.mxu0 0
      %1690 = vmatprep.subr.bf16.mxu0 0
      %1691 = vmatpush1.bf16.msra.mxu0 0
      %1692 = vmatprep.subr.bf16.mxu0 0
      %1693 = vmatpush1.bf16.msra.mxu0 0
      %1694 = vmatprep.subr.bf16.mxu0 0
      %1695 = vmatpush1.bf16.msra.mxu0 0
      %1696 = vmatprep.subr.bf16.mxu0 0
      %1697 = vmatpush1.bf16.msra.mxu0 0
      %1698 = vmatprep.subr.bf16.mxu0 0
      %1699 = vmatpush1.bf16.msra.mxu0 0
      %1700 = vmatprep.subr.bf16.mxu0 0
      %1701 = vmatpush1.bf16.msra.mxu0 0
      %1702 = vmatprep.subr.bf16.mxu0 0
      %1703 = vmatpush1.bf16.msra.mxu0 0
      %1704 = vmatprep.mubr.bf16.mxu0 0
      %1705 = vmatmul.mubr.bf16.gmra.mrb[0].mxu0 %v1670
      %v1706 = vpop.f32.mrb[0].mxu0
      %v1707 = vadd.f32 0.0, %v1706
      %v1708 = vpop.f32.mrb[0].mxu0
      %v1709 = vadd.f32 0.0, %v1708
      %v1710 = vpop.f32.mrb[0].mxu0
      %v1711 = vpop.f32.mrb[0].mxu0
      %1712 = vdwg.mxu0
      %v1713 = vadd.f32 %v1665, %v1707
      %v1714 = vadd.f32 %v1666, %v1709
      %s1715 = scalar_lea.vmem %s4, 20
      %v1716 = vld [vmem:[%s1715] sm:$0xf]
      %v1718 = vsel %vm1366, %v1716, 0
      %1720 = vmatprep.subr.bf16.mxu0 %v1363
      %1721 = vmatpush1.bf16.msra.mxu0 %v1362
      %1722 = vmatprep.subr.bf16.mxu0 %v1372
      %1723 = vmatpush1.bf16.msra.mxu0 %v1372
      %1724 = vmatprep.subr.bf16.mxu0 0
      %1725 = vmatpush1.bf16.msra.mxu0 0
      %1726 = vmatprep.subr.bf16.mxu0 0
      %1727 = vmatpush1.bf16.msra.mxu0 0
      %1728 = vmatprep.subr.bf16.mxu0 0
      %1729 = vmatpush1.bf16.msra.mxu0 0
      %1730 = vmatprep.subr.bf16.mxu0 0
      %1731 = vmatpush1.bf16.msra.mxu0 0
      %1732 = vmatprep.subr.bf16.mxu0 0
      %1733 = vmatpush1.bf16.msra.mxu0 0
      %1734 = vmatprep.subr.bf16.mxu0 0
      %1735 = vmatpush1.bf16.msra.mxu0 0
      %1736 = vmatprep.subr.bf16.mxu0 0
      %1737 = vmatpush1.bf16.msra.mxu0 0
      %1738 = vmatprep.subr.bf16.mxu0 0
      %1739 = vmatpush1.bf16.msra.mxu0 0
      %1740 = vmatprep.subr.bf16.mxu0 0
      %1741 = vmatpush1.bf16.msra.mxu0 0
      %1742 = vmatprep.subr.bf16.mxu0 0
      %1743 = vmatpush1.bf16.msra.mxu0 0
      %1744 = vmatprep.subr.bf16.mxu0 0
      %1745 = vmatpush1.bf16.msra.mxu0 0
      %1746 = vmatprep.subr.bf16.mxu0 0
      %1747 = vmatpush1.bf16.msra.mxu0 0
      %1748 = vmatprep.subr.bf16.mxu0 0
      %1749 = vmatpush1.bf16.msra.mxu0 0
      %1750 = vmatprep.subr.bf16.mxu0 0
      %1751 = vmatpush1.bf16.msra.mxu0 0
      %1752 = vmatprep.mubr.bf16.mxu0 0
      %1753 = vmatmul.mubr.bf16.gmra.mrb[0].mxu0 %v1718
      %v1754 = vpop.f32.mrb[0].mxu0
      %v1755 = vadd.f32 0.0, %v1754
      %v1756 = vpop.f32.mrb[0].mxu0
      %v1757 = vadd.f32 0.0, %v1756
      %v1758 = vpop.f32.mrb[0].mxu0
      %v1759 = vpop.f32.mrb[0].mxu0
      %1760 = vdwg.mxu0
      %1763 = vrot.lane.b32.xlu0 %v1755, 127
      %v1764 = vpop.permute.xlu0 %1763
      %1765 = vrot.lane.b32.xlu0 %v1757, 127
      %v1766 = vpop.permute.xlu0 %1765
      %vm1767 = vcmask 1039360
      %v1768 = vsel %vm1767, %v1764, %v1766
      %v1772 = vsel %vm1767, %v1766, %v1764
      %s1773 = scalar_lea.vmem %s7, 5
      %v1774 = vld [vmem:[%s1773] ss:$8 sm:$0x3]
      %v1776 = vlaneseq
      %v1777 = vshrl.u32 %v1776, 7
      %v1778 = vsub.s32 0, %v1777
      %v1779 = vrot.slane %v1774, %v1778
      %v1780 = vlaneseq
      %v1781 = vshrl.u32 %v1780, 7
      %v1782 = vsub.s32 1, %v1781
      %v1783 = vrot.slane %v1774, %v1782
      %v1786 = vmul.f32 %v1768, %v1779
      %v1787 = vmul.f32 %v1772, %v1783
      %v1788 = vadd.f32 %v1713, %v1786
      %v1789 = vadd.f32 %v1714, %v1787
      %s1790 = scalar_lea.vmem %s4, 24
      %v1791 = vld [vmem:[%s1790] sm:$0xf]
      %v1793 = vsel %vm1366, %v1791, 0
      %1795 = vmatprep.subr.bf16.mxu0 %v1363
      %1796 = vmatpush1.bf16.msra.mxu0 %v1362
      %1797 = vmatprep.subr.bf16.mxu0 %v1372
      %1798 = vmatpush1.bf16.msra.mxu0 %v1372
      %1799 = vmatprep.subr.bf16.mxu0 0
      %1800 = vmatpush1.bf16.msra.mxu0 0
      %1801 = vmatprep.subr.bf16.mxu0 0
      %1802 = vmatpush1.bf16.msra.mxu0 0
      %1803 = vmatprep.subr.bf16.mxu0 0
      %1804 = vmatpush1.bf16.msra.mxu0 0
      %1805 = vmatprep.subr.bf16.mxu0 0
      %1806 = vmatpush1.bf16.msra.mxu0 0
      %1807 = vmatprep.subr.bf16.mxu0 0
      %1808 = vmatpush1.bf16.msra.mxu0 0
      %1809 = vmatprep.subr.bf16.mxu0 0
      %1810 = vmatpush1.bf16.msra.mxu0 0
      %1811 = vmatprep.subr.bf16.mxu0 0
      %1812 = vmatpush1.bf16.msra.mxu0 0
      %1813 = vmatprep.subr.bf16.mxu0 0
      %1814 = vmatpush1.bf16.msra.mxu0 0
      %1815 = vmatprep.subr.bf16.mxu0 0
      %1816 = vmatpush1.bf16.msra.mxu0 0
      %1817 = vmatprep.subr.bf16.mxu0 0
      %1818 = vmatpush1.bf16.msra.mxu0 0
      %1819 = vmatprep.subr.bf16.mxu0 0
      %1820 = vmatpush1.bf16.msra.mxu0 0
      %1821 = vmatprep.subr.bf16.mxu0 0
      %1822 = vmatpush1.bf16.msra.mxu0 0
      %1823 = vmatprep.subr.bf16.mxu0 0
      %1824 = vmatpush1.bf16.msra.mxu0 0
      %1825 = vmatprep.subr.bf16.mxu0 0
      %1826 = vmatpush1.bf16.msra.mxu0 0
      %1827 = vmatprep.mubr.bf16.mxu0 0
      %1828 = vmatmul.mubr.bf16.gmra.mrb[0].mxu0 %v1793
      %v1829 = vpop.f32.mrb[0].mxu0
      %v1830 = vadd.f32 0.0, %v1829
      %v1831 = vpop.f32.mrb[0].mxu0
      %v1832 = vadd.f32 0.0, %v1831
      %v1833 = vpop.f32.mrb[0].mxu0
      %v1834 = vpop.f32.mrb[0].mxu0
      %1835 = vdwg.mxu0
      %1838 = vrot.lane.b32.xlu0 %v1830, 113
      %v1839 = vpop.permute.xlu0 %1838
      %1840 = vrot.lane.b32.xlu0 %v1832, 113
      %v1841 = vpop.permute.xlu0 %1840
      %vm1842 = vcmask 924672
      %v1843 = vsel %vm1842, %v1839, %v1841
      %v1847 = vsel %vm1842, %v1841, %v1839
      %s1848 = scalar_lea.vmem %s7, 6
      %v1849 = vld [vmem:[%s1848] ss:$8 sm:$0x3]
      %v1851 = vlaneseq
      %v1852 = vshrl.u32 %v1851, 7
      %v1853 = vsub.s32 0, %v1852
      %v1854 = vrot.slane %v1849, %v1853
      %v1855 = vlaneseq
      %v1856 = vshrl.u32 %v1855, 7
      %v1857 = vsub.s32 1, %v1856
      %v1858 = vrot.slane %v1849, %v1857
      %v1861 = vmul.f32 %v1843, %v1854
      %v1862 = vmul.f32 %v1847, %v1858
      %v1863 = vadd.f32 %v1788, %v1861
      %v1864 = vadd.f32 %v1789, %v1862
      %s1865 = scalar_lea.vmem %s4, 28
      %v1866 = vld [vmem:[%s1865] sm:$0xf]
      %v1868 = vsel %vm1366, %v1866, 0
      %1870 = vmatprep.subr.bf16.mxu0 %v1363
      %1871 = vmatpush1.bf16.msra.mxu0 %v1362
      %1872 = vmatprep.subr.bf16.mxu0 %v1372
      %1873 = vmatpush1.bf16.msra.mxu0 %v1372
      %1874 = vmatprep.subr.bf16.mxu0 0
      %1875 = vmatpush1.bf16.msra.mxu0 0
      %1876 = vmatprep.subr.bf16.mxu0 0
      %1877 = vmatpush1.bf16.msra.mxu0 0
      %1878 = vmatprep.subr.bf16.mxu0 0
      %1879 = vmatpush1.bf16.msra.mxu0 0
      %1880 = vmatprep.subr.bf16.mxu0 0
      %1881 = vmatpush1.bf16.msra.mxu0 0
      %1882 = vmatprep.subr.bf16.mxu0 0
      %1883 = vmatpush1.bf16.msra.mxu0 0
      %1884 = vmatprep.subr.bf16.mxu0 0
      %1885 = vmatpush1.bf16.msra.mxu0 0
      %1886 = vmatprep.subr.bf16.mxu0 0
      %1887 = vmatpush1.bf16.msra.mxu0 0
      %1888 = vmatprep.subr.bf16.mxu0 0
      %1889 = vmatpush1.bf16.msra.mxu0 0
      %1890 = vmatprep.subr.bf16.mxu0 0
      %1891 = vmatpush1.bf16.msra.mxu0 0
      %1892 = vmatprep.subr.bf16.mxu0 0
      %1893 = vmatpush1.bf16.msra.mxu0 0
      %1894 = vmatprep.subr.bf16.mxu0 0
      %1895 = vmatpush1.bf16.msra.mxu0 0
      %1896 = vmatprep.subr.bf16.mxu0 0
      %1897 = vmatpush1.bf16.msra.mxu0 0
      %1898 = vmatprep.subr.bf16.mxu0 0
      %1899 = vmatpush1.bf16.msra.mxu0 0
      %1900 = vmatprep.subr.bf16.mxu0 0
      %1901 = vmatpush1.bf16.msra.mxu0 0
      %1902 = vmatprep.mubr.bf16.mxu0 0
      %1903 = vmatmul.mubr.bf16.gmra.mrb[0].mxu0 %v1868
      %v1904 = vpop.f32.mrb[0].mxu0
      %v1905 = vadd.f32 0.0, %v1904
      %v1906 = vpop.f32.mrb[0].mxu0
      %v1907 = vadd.f32 0.0, %v1906
      %v1908 = vpop.f32.mrb[0].mxu0
      %v1909 = vpop.f32.mrb[0].mxu0
      %1910 = vdwg.mxu0
      %1913 = vrot.lane.b32.xlu0 %v1905, 112
      %v1914 = vpop.permute.xlu0 %1913
      %1915 = vrot.lane.b32.xlu0 %v1907, 112
      %v1916 = vpop.permute.xlu0 %1915
      %vm1917 = vcmask 916480
      %v1918 = vsel %vm1917, %v1914, %v1916
      %v1922 = vsel %vm1917, %v1916, %v1914
      %s1923 = scalar_lea.vmem %s7, 7
      %v1924 = vld [vmem:[%s1923] ss:$8 sm:$0x3]
      %v1926 = vlaneseq
      %v1927 = vshrl.u32 %v1926, 7
      %v1928 = vsub.s32 0, %v1927
      %v1929 = vrot.slane %v1924, %v1928
      %v1930 = vlaneseq
      %v1931 = vshrl.u32 %v1930, 7
      %v1932 = vsub.s32 1, %v1931
      %v1933 = vrot.slane %v1924, %v1932
      %v1936 = vmul.f32 %v1918, %v1929
      %v1937 = vmul.f32 %v1922, %v1933
      %v1938 = vadd.f32 %v1863, %v1936
      %v1939 = vadd.f32 %v1864, %v1937
      %s1940 = scalar_lea.vmem %s4, 32
      %v1941 = vld [vmem:[%s1940] sm:$0xf]
      %v1943 = vsel %vm1366, %v1941, 0
      %1945 = vmatprep.subr.bf16.mxu0 %v1363
      %1946 = vmatpush1.bf16.msra.mxu0 %v1362
      %1947 = vmatprep.subr.bf16.mxu0 %v1372
      %1948 = vmatpush1.bf16.msra.mxu0 %v1372
      %1949 = vmatprep.subr.bf16.mxu0 0
      %1950 = vmatpush1.bf16.msra.mxu0 0
      %1951 = vmatprep.subr.bf16.mxu0 0
      %1952 = vmatpush1.bf16.msra.mxu0 0
      %1953 = vmatprep.subr.bf16.mxu0 0
      %1954 = vmatpush1.bf16.msra.mxu0 0
      %1955 = vmatprep.subr.bf16.mxu0 0
      %1956 = vmatpush1.bf16.msra.mxu0 0
      %1957 = vmatprep.subr.bf16.mxu0 0
      %1958 = vmatpush1.bf16.msra.mxu0 0
      %1959 = vmatprep.subr.bf16.mxu0 0
      %1960 = vmatpush1.bf16.msra.mxu0 0
      %1961 = vmatprep.subr.bf16.mxu0 0
      %1962 = vmatpush1.bf16.msra.mxu0 0
      %1963 = vmatprep.subr.bf16.mxu0 0
      %1964 = vmatpush1.bf16.msra.mxu0 0
      %1965 = vmatprep.subr.bf16.mxu0 0
      %1966 = vmatpush1.bf16.msra.mxu0 0
      %1967 = vmatprep.subr.bf16.mxu0 0
      %1968 = vmatpush1.bf16.msra.mxu0 0
      %1969 = vmatprep.subr.bf16.mxu0 0
      %1970 = vmatpush1.bf16.msra.mxu0 0
      %1971 = vmatprep.subr.bf16.mxu0 0
      %1972 = vmatpush1.bf16.msra.mxu0 0
      %1973 = vmatprep.subr.bf16.mxu0 0
      %1974 = vmatpush1.bf16.msra.mxu0 0
      %1975 = vmatprep.subr.bf16.mxu0 0
      %1976 = vmatpush1.bf16.msra.mxu0 0
      %1977 = vmatprep.mubr.bf16.mxu0 0
      %1978 = vmatmul.mubr.bf16.gmra.mrb[0].mxu0 %v1943
      %v1979 = vpop.f32.mrb[0].mxu0
      %v1980 = vadd.f32 0.0, %v1979
      %v1981 = vpop.f32.mrb[0].mxu0
      %v1982 = vadd.f32 0.0, %v1981
      %v1983 = vpop.f32.mrb[0].mxu0
      %v1984 = vpop.f32.mrb[0].mxu0
      %1985 = vdwg.mxu0
      %1988 = vrot.lane.b32.xlu0 %v1980, 111
      %v1989 = vpop.permute.xlu0 %1988
      %1990 = vrot.lane.b32.xlu0 %v1982, 111
      %v1991 = vpop.permute.xlu0 %1990
      %vm1992 = vcmask 908288
      %v1993 = vsel %vm1992, %v1989, %v1991
      %v1997 = vsel %vm1992, %v1991, %v1989
      %s1998 = scalar_lea.vmem %s7, 16
      %v1999 = vld [vmem:[%s1998] ss:$8 sm:$0x3]
      %v2001 = vlaneseq
      %v2002 = vshrl.u32 %v2001, 7
      %v2003 = vsub.s32 0, %v2002
      %v2004 = vrot.slane %v1999, %v2003
      %v2005 = vlaneseq
      %v2006 = vshrl.u32 %v2005, 7
      %v2007 = vsub.s32 1, %v2006
      %v2008 = vrot.slane %v1999, %v2007
      %v2011 = vmul.f32 %v1993, %v2004
      %v2012 = vmul.f32 %v1997, %v2008
      %v2013 = vadd.f32 %v1938, %v2011
      %v2014 = vadd.f32 %v1939, %v2012
      %2015 = vset.pattern.permute.xlu0 1
      %2016 = vperm.xlu0 %2015, %v954
      %v2017 = vpop.permute.xlu0 %2016
      %v2019 = vadd.f32 %v2013, %v2017
      %v2020 = vadd.f32 %v2014, %v2017
      %v2021 = vmax.f32 %v2019, 0.0
      %v2022 = vmax.f32 %v2020, 0.0
      %2023 = vset.pattern.permute.xlu0 2
      %2024 = vperm.xlu0 %2023, %v954
      %v2025 = vpop.permute.xlu0 %2024
      %v2027 = vmul.f32 %v2021, %v2025
      %v2028 = vmul.f32 %v2022, %v2025
      %2029 = vset.pattern.permute.xlu0 3
      %2030 = vperm.xlu0 %2029, %v954
      %v2031 = vpop.permute.xlu0 %2030
      %v2033 = vadd.f32 %v2027, %v2031
      %v2034 = vadd.f32 %v2028, %v2031
      %2035 = vst [vmem:[%s366] sm:$0xff] %v2033
      %2036 = vst [vmem:[%s366 + $0x8] sm:$0xff] %v2034
      %p2037 = scmp.lt.s32.totalorder %s20, 1
      %s2038 = scalar_select %p2037, %s20, 1
      %s2039 = smul.addr %s2038, 2
      %s2040 = smul.addr %s2039, 8
      %s2041 = scalar_lea.vmem %s9, %s2040
      // Predicated region
      $region57: #{_lambda_.1} parent=55 // pred_check
        %p2042 = pneg %p242
      $region58: #{_lambda_.1} parent=55 // pred_check_branch
        %2044 = sbr.rel (%p2042) target = $region60
      $region59: #{_lambda_.1} parent=55 // pred_region
        _
      $region60: #{_lambda_.1} parent=55 // pred_fallthru
        _
    $region56: #{_lambda_.1} parent=5 // pred_fallthru
      _
    %p2045 = scmp.le.s32.totalorder 2, %s15
    // Predicated region
    $region61: #{_lambda_.1} parent=5 // pred_check
      %p2046 = pneg %p2045
    $region62: #{_lambda_.1} parent=5 // pred_check_branch
      %2048 = sbr.rel (%p2046) target = $region64
    $region63: #{_lambda_.1} parent=5 // pred_region
      %s2049 = ssub.s32 %s15, 2
      // Predicated region
      $region65: #{_lambda_.1} parent=63 // pred_check
        %p2050 = pneg %p248
      $region66: #{_lambda_.1} parent=63 // pred_check_branch
        %2052 = sbr.rel (%p2050) target = $region68
      $region67: #{_lambda_.1} parent=63 // pred_region
        %p2053 = scmp.lt.s32.totalorder %s21, 1
        %s2054 = scalar_select %p2053, %s21, 1
        %s2055 = smul.addr %s2054, 2
        %s2056 = smul.addr %s2055, 8
        %s2057 = scalar_lea.vmem %s9, %s2056
      $region68: #{_lambda_.1} parent=63 // pred_fallthru
        _
    $region64: #{_lambda_.1} parent=5 // pred_fallthru
      _
  $region6: #{_lambda_.1} parent=0 // loop_footer
    %s19 = sadd.s32 1, %s15
  $region7: #{_lambda_.1} parent=0 // loop_footer_branch
    %14 = sbr.rel target = $region3
  $region8: #{_lambda_.1} parent=0 // loop_exit
    _

</llo_original>
